<compile_context>
chip_gen: v5e
topology: v5e:2x2
jax: 0.10.0
libtpu: 0.0.40
codegen_flags: <defaults>
</compile_context>

<pallas_src>
import functools

import jax
import jax.numpy as jnp
from jax.experimental import pallas as pl
from jax.experimental.pallas import tpu as pltpu

EPS = 1e-5


# ---------------------------------------------------------------------------
# In-kernel helpers (pure jnp, traced inside the Pallas kernel)
# ---------------------------------------------------------------------------
def _shift_lanes(v, k):
    """w[:, l] = v[:, (l + k) % L] for static int k (lane rotation via slices).

    # TODO(synk): switch to pltpu.roll (XLU slot, co-issues with the VPU) once
    # its rotation direction is pinned by a hardware test; on the lane-dense
    # (N*C, H*W) slab this slice+concat form is only a couple of vreg copies.
    """
    L = v.shape[-1]
    k %= L
    if k == 0:
        return v
    return jnp.concatenate([v[:, k:], v[:, :k]], axis=-1)


def _conv3x3(v, w_ref, masks, W):
    """Reflection-padded 3x3 conv on a (N*C, H*W) slab.

    w_ref: (9, N*Cout, N*Cin) block-diagonal per-tap weights,
    tap index t = 3*(dx+1) + (dy+1).
    """
    is_x0, is_xW, is_y0, is_yH = masks
    left = _shift_lanes(v, -1)      # value at (y, x-1) for interior columns
    right = _shift_lanes(v, 1)      # value at (y, x+1)
    hplanes = (
        jnp.where(is_x0, right, left),    # dx = -1  (reflect x=-1 -> x=1)
        v,                                # dx =  0
        jnp.where(is_xW, left, right),    # dx = +1  (reflect x=W -> x=W-2)
    )
    acc = None
    t = 0
    for hp in hplanes:
        up = _shift_lanes(hp, -W)         # value at (y-1, x')
        down = _shift_lanes(hp, W)        # value at (y+1, x')
        for tap in (jnp.where(is_y0, down, up),    # dy = -1 (reflect y=-1 -> 1)
                    hp,                            # dy =  0
                    jnp.where(is_yH, up, down)):   # dy = +1 (reflect y=H -> H-2)
            part = jnp.dot(w_ref[t], tap, preferred_element_type=jnp.float32)
            acc = part if acc is None else acc + part
            t += 1
    return acc


def _batchnorm(y, p_ref, g_ref, b_ref):
    """Training-mode BatchNorm on a (N*C, H*W) slab (biased batch statistics).

    p_ref: (N*C, N*C) selector with entries 1/(N*H*W) where rows share a
    channel; g_ref / b_ref: (N*C, 1) per-row gamma / beta.
    """
    p = p_ref[...]
    # Per-channel mean over (batch rows, all lanes): the selector matmul mixes
    # the rows of one channel, the lane reduction finishes the mean.
    mean = jnp.sum(jnp.dot(p, y, preferred_element_type=jnp.float32),
                   axis=1, keepdims=True)                         # (R, 1)
    c = y - mean
    var = jnp.sum(jnp.dot(p, c * c, preferred_element_type=jnp.float32),
                  axis=1, keepdims=True)                          # biased var
    scale = g_ref[...] * jax.lax.rsqrt(var + EPS)                 # (R, 1)
    shift = b_ref[...] - mean * scale
    return y * scale + shift                                      # 2 full-tensor ops


# ---------------------------------------------------------------------------
# Fused resBlock kernel
# ---------------------------------------------------------------------------
def _resblock_kernel(x_ref, col_ref, row_ref, w1_ref, w2_ref, p_ref,
                     g1_ref, b1_ref, g2_ref, b2_ref, o_ref, *, H, W):
    x = x_ref[...]                                  # (N*C, H*W) f32; residual too
    col = col_ref[...]                              # spatial x index per lane
    row = row_ref[...]                              # spatial y index per lane
    masks = (col == 0, col == W - 1, row == 0, row == H - 1)

    # conv1 -> BN1 -> ReLU   (intermediate never leaves VMEM/vregs)
    y = _conv3x3(x, w1_ref, masks, W)
    y = jnp.maximum(_batchnorm(y, p_ref, g1_ref, b1_ref), 0.0)

    # conv2 -> BN2 -> +x -> ReLU
    y = _conv3x3(y, w2_ref, masks, W)
    y = _batchnorm(y, p_ref, g2_ref, b2_ref) + x
    o_ref[...] = jnp.maximum(y, 0.0)                # lane-dense (N*C, H*W) store


# ---------------------------------------------------------------------------
# Wrapper
# ---------------------------------------------------------------------------
def _expand_tap_weights(w, N):
    """(Cout, Cin, 3, 3) OIHW -> (9, N*Cout, N*Cin) block-diagonal per-tap
    weights, tap order t = 3*(dx+1) + (dy+1) matching the kernel."""
    eye_n = jnp.eye(N, dtype=jnp.float32)
    taps = []
    for dx in (-1, 0, 1):
        for dy in (-1, 0, 1):
            wt = w[:, :, dy + 1, dx + 1].astype(jnp.float32)     # (Cout, Cin)
            taps.append(jnp.kron(eye_n, wt))                     # (N*Co, N*Ci)
    return jnp.stack(taps, axis=0)


@jax.jit
def res_block_standard(x_nchw, w1, w2, g1, b1, g2, b2):
    """x_nchw: (N, C, H, W); w1, w2: (Cout, Cin, 3, 3) PyTorch OIHW layout."""
    N, C, H, W = x_nchw.shape
    Cout = w1.shape[0]
    assert Cout == C, "standard resBlock branch requires inchannel == outchannel"
    assert H >= 2 and W >= 2, "reflection pad needs H >= 2 and W >= 2"
    R, HW = N * C, H * W

    # NCHW -> (N*C, H*W): pure reshape of contiguous dims (no transpose, no
    # extra HBM traffic). Batch*channel on sublanes, flattened spatial on lanes.
    x2d = x_nchw.reshape(R, HW).astype(jnp.float32)

    w1t = _expand_tap_weights(w1, N)                               # (9, R, R)
    w2t = _expand_tap_weights(w2, N)

    rows = jnp.arange(R)
    p = ((rows[:, None] % C) == (rows[None, :] % C)).astype(jnp.float32) / (N * HW)

    col_ids = jnp.broadcast_to(
        jnp.tile(jnp.arange(W, dtype=jnp.int32), H), (R, HW))     # lane -> x
    row_ids = jnp.broadcast_to(
        jnp.repeat(jnp.arange(H, dtype=jnp.int32), W), (R, HW))   # lane -> y

    def rowsify(v):  # (C,) -> (N*C, 1) with row n*C + c <- v[c]
        return jnp.tile(v.reshape(1, C), (N, 1)).reshape(R, 1).astype(jnp.float32)

    vmem = pl.BlockSpec(memory_space=pltpu.MemorySpace.VMEM)
    out2d = pl.pallas_call(
        functools.partial(_resblock_kernel, H=H, W=W),
        out_shape=jax.ShapeDtypeStruct((R, HW), jnp.float32),
        in_specs=[vmem] * 10,
        out_specs=vmem,
        compiler_params=pltpu.CompilerParams(vmem_limit_bytes=32 * 1024 * 1024),
    )(x2d, col_ids, row_ids, w1t, w2t, p,
      rowsify(g1), rowsify(b1), rowsify(g2), rowsify(b2))

    return out2d.reshape(N, C, H, W)                               # free reshape


# ---------------------------------------------------------------------------
# Reference (exact f32 NCHW math of the PyTorch module)
# ---------------------------------------------------------------------------
def _reference_f32(x, w1, w2, g1, b1, g2, b2):
    def conv(a, w):
        ap = jnp.pad(a, ((0, 0), (0, 0), (1, 1), (1, 1)), mode="reflect")
        return jax.lax.conv_general_dilated(
            ap, w, (1, 1), "VALID",
            dimension_numbers=("NCHW", "OIHW", "NCHW"),
            precision=jax.lax.Precision.HIGHEST)

    def bn(y, g, b):
        m = jnp.mean(y, axis=(0, 2, 3), keepdims=True)
        v = jnp.mean(jnp.square(y - m), axis=(0, 2, 3), keepdims=True)
        return (y - m) / jnp.sqrt(v + EPS) * g.reshape(1, -1, 1, 1) + b.reshape(1, -1, 1, 1)

    y = jax.nn.relu(bn(conv(x, w1), g1, b1))
    y = bn(conv(y, w2), g2, b2) + x
    return jax.nn.relu(y)


if __name__ == "__main__":
    N, C, H, W = 2, 4, 16, 16  # inchannel == outchannel == 4

    key = jax.random.PRNGKey(0)
    kx, kw1, kw2 = jax.random.split(key, 3)
    x = jax.random.normal(kx, (N, C, H, W), jnp.float32)
    w1 = 0.1 * jax.random.normal(kw1, (C, C, 3, 3), jnp.float32)  # OIHW
    w2 = 0.1 * jax.random.normal(kw2, (C, C, 3, 3), jnp.float32)
    g1 = jnp.ones((C,), jnp.float32)   # BatchNorm default affine params
    b1 = jnp.zeros((C,), jnp.float32)
    g2 = jnp.ones((C,), jnp.float32)
    b2 = jnp.zeros((C,), jnp.float32)

    out = jax.block_until_ready(res_block_standard(x, w1, w2, g1, b1, g2, b2))
    assert out.shape == (N, C, H, W)

    ref = jax.block_until_ready(_reference_f32(x, w1, w2, g1, b1, g2, b2))
    err = jnp.abs(out - ref)
    max_err, mean_err = float(jnp.max(err)), float(jnp.mean(err))
    # f32 accumulation throughout; tolerance leaves headroom for the MXU's
    # default matmul precision amplified through two BatchNorm 1/sigma rescales.
    assert max_err < 1e-1 and mean_err < 1e-2, (max_err, mean_err)

    print("KERNEL_OK")
</pallas_src>

<mosaic_0001>
module attributes {stable_mosaic.version = 11 : i64} {
  func.func @_resblock_kernel(%arg0: memref<8x256xf32, #tpu.memory_space<vmem>>, %arg1: memref<8x256xi32, #tpu.memory_space<vmem>>, %arg2: memref<8x256xi32, #tpu.memory_space<vmem>>, %arg3: memref<9x8x8xf32, #tpu.memory_space<vmem>>, %arg4: memref<9x8x8xf32, #tpu.memory_space<vmem>>, %arg5: memref<8x8xf32, #tpu.memory_space<vmem>>, %arg6: memref<8x1xf32, #tpu.memory_space<vmem>>, %arg7: memref<8x1xf32, #tpu.memory_space<vmem>>, %arg8: memref<8x1xf32, #tpu.memory_space<vmem>>, %arg9: memref<8x1xf32, #tpu.memory_space<vmem>>, %arg10: memref<8x256xf32, #tpu.memory_space<vmem>>) attributes {dimension_semantics = [], scalar_prefetch = 0 : i64, scratch_operands = 0 : i64, tpu.core_type = #tpu.core_type<tc>} {
    %c0 = arith.constant 0 : index
    %c0_0 = arith.constant 0 : index
    %0 = vector.load %arg0[%c0, %c0_0] : memref<8x256xf32, #tpu.memory_space<vmem>>, vector<8x256xf32>
    %c0_1 = arith.constant 0 : index
    %c0_2 = arith.constant 0 : index
    %1 = vector.load %arg1[%c0_1, %c0_2] : memref<8x256xi32, #tpu.memory_space<vmem>>, vector<8x256xi32>
    %c0_3 = arith.constant 0 : index
    %c0_4 = arith.constant 0 : index
    %2 = vector.load %arg2[%c0_3, %c0_4] : memref<8x256xi32, #tpu.memory_space<vmem>>, vector<8x256xi32>
    %c0_i32 = arith.constant 0 : i32
    %3 = vector.broadcast %c0_i32 : i32 to vector<8x256xi32>
    %4 = arith.cmpi eq, %1, %3 : vector<8x256xi32>
    %c15_i32 = arith.constant 15 : i32
    %5 = vector.broadcast %c15_i32 : i32 to vector<8x256xi32>
    %6 = arith.cmpi eq, %1, %5 : vector<8x256xi32>
    %c0_i32_5 = arith.constant 0 : i32
    %7 = vector.broadcast %c0_i32_5 : i32 to vector<8x256xi32>
    %8 = arith.cmpi eq, %2, %7 : vector<8x256xi32>
    %c15_i32_6 = arith.constant 15 : i32
    %9 = vector.broadcast %c15_i32_6 : i32 to vector<8x256xi32>
    %10 = arith.cmpi eq, %2, %9 : vector<8x256xi32>
    %11 = vector.extract_strided_slice %0 {offsets = [0, 255], sizes = [8, 1], strides = [1, 1]} : vector<8x256xf32> to vector<8x1xf32>
    %12 = vector.extract_strided_slice %0 {offsets = [0, 0], sizes = [8, 255], strides = [1, 1]} : vector<8x256xf32> to vector<8x255xf32>
    %13 = tpu.concatenate %11, %12 in 1 : vector<8x1xf32>, vector<8x255xf32> -> vector<8x256xf32>
    %14 = vector.extract_strided_slice %0 {offsets = [0, 1], sizes = [8, 255], strides = [1, 1]} : vector<8x256xf32> to vector<8x255xf32>
    %15 = vector.extract_strided_slice %0 {offsets = [0, 0], sizes = [8, 1], strides = [1, 1]} : vector<8x256xf32> to vector<8x1xf32>
    %16 = tpu.concatenate %14, %15 in 1 : vector<8x255xf32>, vector<8x1xf32> -> vector<8x256xf32>
    %17 = arith.select %4, %16, %13 : vector<8x256xi1>, vector<8x256xf32>
    %18 = arith.select %6, %13, %16 : vector<8x256xi1>, vector<8x256xf32>
    %19 = vector.extract_strided_slice %17 {offsets = [0, 240], sizes = [8, 16], strides = [1, 1]} : vector<8x256xf32> to vector<8x16xf32>
    %20 = vector.extract_strided_slice %17 {offsets = [0, 0], sizes = [8, 240], strides = [1, 1]} : vector<8x256xf32> to vector<8x240xf32>
    %21 = tpu.concatenate %19, %20 in 1 : vector<8x16xf32>, vector<8x240xf32> -> vector<8x256xf32>
    %22 = vector.extract_strided_slice %17 {offsets = [0, 16], sizes = [8, 240], strides = [1, 1]} : vector<8x256xf32> to vector<8x240xf32>
    %23 = vector.extract_strided_slice %17 {offsets = [0, 0], sizes = [8, 16], strides = [1, 1]} : vector<8x256xf32> to vector<8x16xf32>
    %24 = tpu.concatenate %22, %23 in 1 : vector<8x240xf32>, vector<8x16xf32> -> vector<8x256xf32>
    %25 = arith.select %8, %24, %21 : vector<8x256xi1>, vector<8x256xf32>
    %26 = arith.select %10, %21, %24 : vector<8x256xi1>, vector<8x256xf32>
    %c0_7 = arith.constant 0 : index
    %c0_8 = arith.constant 0 : index
    %c0_9 = arith.constant 0 : index
    %27 = vector.load %arg3[%c0_7, %c0_8, %c0_9] : memref<9x8x8xf32, #tpu.memory_space<vmem>>, vector<1x8x8xf32>
    %28 = vector.shape_cast %27 : vector<1x8x8xf32> to vector<8x8xf32>
    %cst = arith.constant dense<0.000000e+00> : vector<8x256xf32>
    %29 = tpu.matmul %28, %25, %cst {dimension_numbers = #tpu.dot_dimension_numbers<[1], [0], [0], [1], [0, 0, 1, 1], [], []>} : vector<8x8xf32>, vector<8x256xf32>, vector<8x256xf32> -> vector<8x256xf32>
    %c1 = arith.constant 1 : index
    %c0_10 = arith.constant 0 : index
    %c0_11 = arith.constant 0 : index
    %30 = vector.load %arg3[%c1, %c0_10, %c0_11] : memref<9x8x8xf32, #tpu.memory_space<vmem>>, vector<1x8x8xf32>
    %31 = vector.shape_cast %30 : vector<1x8x8xf32> to vector<8x8xf32>
    %cst_12 = arith.constant dense<0.000000e+00> : vector<8x256xf32>
    %32 = tpu.matmul %31, %17, %cst_12 {dimension_numbers = #tpu.dot_dimension_numbers<[1], [0], [0], [1], [0, 0, 1, 1], [], []>} : vector<8x8xf32>, vector<8x256xf32>, vector<8x256xf32> -> vector<8x256xf32>
    %33 = arith.addf %29, %32 : vector<8x256xf32>
    %c2 = arith.constant 2 : index
    %c0_13 = arith.constant 0 : index
    %c0_14 = arith.constant 0 : index
    %34 = vector.load %arg3[%c2, %c0_13, %c0_14] : memref<9x8x8xf32, #tpu.memory_space<vmem>>, vector<1x8x8xf32>
    %35 = vector.shape_cast %34 : vector<1x8x8xf32> to vector<8x8xf32>
    %cst_15 = arith.constant dense<0.000000e+00> : vector<8x256xf32>
    %36 = tpu.matmul %35, %26, %cst_15 {dimension_numbers = #tpu.dot_dimension_numbers<[1], [0], [0], [1], [0, 0, 1, 1], [], []>} : vector<8x8xf32>, vector<8x256xf32>, vector<8x256xf32> -> vector<8x256xf32>
    %37 = arith.addf %33, %36 : vector<8x256xf32>
    %38 = vector.extract_strided_slice %0 {offsets = [0, 240], sizes = [8, 16], strides = [1, 1]} : vector<8x256xf32> to vector<8x16xf32>
    %39 = vector.extract_strided_slice %0 {offsets = [0, 0], sizes = [8, 240], strides = [1, 1]} : vector<8x256xf32> to vector<8x240xf32>
    %40 = tpu.concatenate %38, %39 in 1 : vector<8x16xf32>, vector<8x240xf32> -> vector<8x256xf32>
    %41 = vector.extract_strided_slice %0 {offsets = [0, 16], sizes = [8, 240], strides = [1, 1]} : vector<8x256xf32> to vector<8x240xf32>
    %42 = vector.extract_strided_slice %0 {offsets = [0, 0], sizes = [8, 16], strides = [1, 1]} : vector<8x256xf32> to vector<8x16xf32>
    %43 = tpu.concatenate %41, %42 in 1 : vector<8x240xf32>, vector<8x16xf32> -> vector<8x256xf32>
    %44 = arith.select %8, %43, %40 : vector<8x256xi1>, vector<8x256xf32>
    %45 = arith.select %10, %40, %43 : vector<8x256xi1>, vector<8x256xf32>
    %c3 = arith.constant 3 : index
    %c0_16 = arith.constant 0 : index
    %c0_17 = arith.constant 0 : index
    %46 = vector.load %arg3[%c3, %c0_16, %c0_17] : memref<9x8x8xf32, #tpu.memory_space<vmem>>, vector<1x8x8xf32>
    %47 = vector.shape_cast %46 : vector<1x8x8xf32> to vector<8x8xf32>
    %cst_18 = arith.constant dense<0.000000e+00> : vector<8x256xf32>
    %48 = tpu.matmul %47, %44, %cst_18 {dimension_numbers = #tpu.dot_dimension_numbers<[1], [0], [0], [1], [0, 0, 1, 1], [], []>} : vector<8x8xf32>, vector<8x256xf32>, vector<8x256xf32> -> vector<8x256xf32>
    %49 = arith.addf %37, %48 : vector<8x256xf32>
    %c4 = arith.constant 4 : index
    %c0_19 = arith.constant 0 : index
    %c0_20 = arith.constant 0 : index
    %50 = vector.load %arg3[%c4, %c0_19, %c0_20] : memref<9x8x8xf32, #tpu.memory_space<vmem>>, vector<1x8x8xf32>
    %51 = vector.shape_cast %50 : vector<1x8x8xf32> to vector<8x8xf32>
    %cst_21 = arith.constant dense<0.000000e+00> : vector<8x256xf32>
    %52 = tpu.matmul %51, %0, %cst_21 {dimension_numbers = #tpu.dot_dimension_numbers<[1], [0], [0], [1], [0, 0, 1, 1], [], []>} : vector<8x8xf32>, vector<8x256xf32>, vector<8x256xf32> -> vector<8x256xf32>
    %53 = arith.addf %49, %52 : vector<8x256xf32>
    %c5 = arith.constant 5 : index
    %c0_22 = arith.constant 0 : index
    %c0_23 = arith.constant 0 : index
    %54 = vector.load %arg3[%c5, %c0_22, %c0_23] : memref<9x8x8xf32, #tpu.memory_space<vmem>>, vector<1x8x8xf32>
    %55 = vector.shape_cast %54 : vector<1x8x8xf32> to vector<8x8xf32>
    %cst_24 = arith.constant dense<0.000000e+00> : vector<8x256xf32>
    %56 = tpu.matmul %55, %45, %cst_24 {dimension_numbers = #tpu.dot_dimension_numbers<[1], [0], [0], [1], [0, 0, 1, 1], [], []>} : vector<8x8xf32>, vector<8x256xf32>, vector<8x256xf32> -> vector<8x256xf32>
    %57 = arith.addf %53, %56 : vector<8x256xf32>
    %58 = vector.extract_strided_slice %18 {offsets = [0, 240], sizes = [8, 16], strides = [1, 1]} : vector<8x256xf32> to vector<8x16xf32>
    %59 = vector.extract_strided_slice %18 {offsets = [0, 0], sizes = [8, 240], strides = [1, 1]} : vector<8x256xf32> to vector<8x240xf32>
    %60 = tpu.concatenate %58, %59 in 1 : vector<8x16xf32>, vector<8x240xf32> -> vector<8x256xf32>
    %61 = vector.extract_strided_slice %18 {offsets = [0, 16], sizes = [8, 240], strides = [1, 1]} : vector<8x256xf32> to vector<8x240xf32>
    %62 = vector.extract_strided_slice %18 {offsets = [0, 0], sizes = [8, 16], strides = [1, 1]} : vector<8x256xf32> to vector<8x16xf32>
    %63 = tpu.concatenate %61, %62 in 1 : vector<8x240xf32>, vector<8x16xf32> -> vector<8x256xf32>
    %64 = arith.select %8, %63, %60 : vector<8x256xi1>, vector<8x256xf32>
    %65 = arith.select %10, %60, %63 : vector<8x256xi1>, vector<8x256xf32>
    %c6 = arith.constant 6 : index
    %c0_25 = arith.constant 0 : index
    %c0_26 = arith.constant 0 : index
    %66 = vector.load %arg3[%c6, %c0_25, %c0_26] : memref<9x8x8xf32, #tpu.memory_space<vmem>>, vector<1x8x8xf32>
    %67 = vector.shape_cast %66 : vector<1x8x8xf32> to vector<8x8xf32>
    %cst_27 = arith.constant dense<0.000000e+00> : vector<8x256xf32>
    %68 = tpu.matmul %67, %64, %cst_27 {dimension_numbers = #tpu.dot_dimension_numbers<[1], [0], [0], [1], [0, 0, 1, 1], [], []>} : vector<8x8xf32>, vector<8x256xf32>, vector<8x256xf32> -> vector<8x256xf32>
    %69 = arith.addf %57, %68 : vector<8x256xf32>
    %c7 = arith.constant 7 : index
    %c0_28 = arith.constant 0 : index
    %c0_29 = arith.constant 0 : index
    %70 = vector.load %arg3[%c7, %c0_28, %c0_29] : memref<9x8x8xf32, #tpu.memory_space<vmem>>, vector<1x8x8xf32>
    %71 = vector.shape_cast %70 : vector<1x8x8xf32> to vector<8x8xf32>
    %cst_30 = arith.constant dense<0.000000e+00> : vector<8x256xf32>
    %72 = tpu.matmul %71, %18, %cst_30 {dimension_numbers = #tpu.dot_dimension_numbers<[1], [0], [0], [1], [0, 0, 1, 1], [], []>} : vector<8x8xf32>, vector<8x256xf32>, vector<8x256xf32> -> vector<8x256xf32>
    %73 = arith.addf %69, %72 : vector<8x256xf32>
    %c8 = arith.constant 8 : index
    %c0_31 = arith.constant 0 : index
    %c0_32 = arith.constant 0 : index
    %74 = vector.load %arg3[%c8, %c0_31, %c0_32] : memref<9x8x8xf32, #tpu.memory_space<vmem>>, vector<1x8x8xf32>
    %75 = vector.shape_cast %74 : vector<1x8x8xf32> to vector<8x8xf32>
    %cst_33 = arith.constant dense<0.000000e+00> : vector<8x256xf32>
    %76 = tpu.matmul %75, %65, %cst_33 {dimension_numbers = #tpu.dot_dimension_numbers<[1], [0], [0], [1], [0, 0, 1, 1], [], []>} : vector<8x8xf32>, vector<8x256xf32>, vector<8x256xf32> -> vector<8x256xf32>
    %77 = arith.addf %73, %76 : vector<8x256xf32>
    %c0_34 = arith.constant 0 : index
    %c0_35 = arith.constant 0 : index
    %78 = vector.load %arg5[%c0_34, %c0_35] : memref<8x8xf32, #tpu.memory_space<vmem>>, vector<8x8xf32>
    %cst_36 = arith.constant dense<0.000000e+00> : vector<8x256xf32>
    %79 = tpu.matmul %78, %77, %cst_36 {dimension_numbers = #tpu.dot_dimension_numbers<[1], [0], [0], [1], [0, 0, 1, 1], [], []>} : vector<8x8xf32>, vector<8x256xf32>, vector<8x256xf32> -> vector<8x256xf32>
    %cst_37 = arith.constant dense<0.000000e+00> : vector<8xf32>
    %80 = vector.multi_reduction <add>, %79, %cst_37 [1] : vector<8x256xf32> to vector<8xf32>
    %81 = vector.shape_cast %80 : vector<8xf32> to vector<8x1xf32>
    %82 = vector.broadcast %81 : vector<8x1xf32> to vector<8x256xf32>
    %83 = arith.subf %77, %82 : vector<8x256xf32>
    %84 = arith.mulf %83, %83 : vector<8x256xf32>
    %cst_38 = arith.constant dense<0.000000e+00> : vector<8x256xf32>
    %85 = tpu.matmul %78, %84, %cst_38 {dimension_numbers = #tpu.dot_dimension_numbers<[1], [0], [0], [1], [0, 0, 1, 1], [], []>} : vector<8x8xf32>, vector<8x256xf32>, vector<8x256xf32> -> vector<8x256xf32>
    %cst_39 = arith.constant dense<0.000000e+00> : vector<8xf32>
    %86 = vector.multi_reduction <add>, %85, %cst_39 [1] : vector<8x256xf32> to vector<8xf32>
    %87 = vector.shape_cast %86 : vector<8xf32> to vector<8x1xf32>
    %c0_40 = arith.constant 0 : index
    %c0_41 = arith.constant 0 : index
    %88 = vector.load %arg6[%c0_40, %c0_41] : memref<8x1xf32, #tpu.memory_space<vmem>>, vector<8x1xf32>
    %cst_42 = arith.constant 9.99999974E-6 : f32
    %89 = vector.broadcast %cst_42 : f32 to vector<8x1xf32>
    %90 = arith.addf %87, %89 : vector<8x1xf32>
    %91 = math.rsqrt %90 : vector<8x1xf32>
    %92 = arith.mulf %88, %91 : vector<8x1xf32>
    %c0_43 = arith.constant 0 : index
    %c0_44 = arith.constant 0 : index
    %93 = vector.load %arg7[%c0_43, %c0_44] : memref<8x1xf32, #tpu.memory_space<vmem>>, vector<8x1xf32>
    %94 = arith.mulf %81, %92 : vector<8x1xf32>
    %95 = arith.subf %93, %94 : vector<8x1xf32>
    %96 = vector.broadcast %92 : vector<8x1xf32> to vector<8x256xf32>
    %97 = arith.mulf %77, %96 : vector<8x256xf32>
    %98 = vector.broadcast %95 : vector<8x1xf32> to vector<8x256xf32>
    %99 = arith.addf %97, %98 : vector<8x256xf32>
    %cst_45 = arith.constant 0.000000e+00 : f32
    %100 = vector.broadcast %cst_45 : f32 to vector<8x256xf32>
    %101 = arith.maximumf %99, %100 : vector<8x256xf32>
    %102 = vector.extract_strided_slice %101 {offsets = [0, 255], sizes = [8, 1], strides = [1, 1]} : vector<8x256xf32> to vector<8x1xf32>
    %103 = vector.extract_strided_slice %101 {offsets = [0, 0], sizes = [8, 255], strides = [1, 1]} : vector<8x256xf32> to vector<8x255xf32>
    %104 = tpu.concatenate %102, %103 in 1 : vector<8x1xf32>, vector<8x255xf32> -> vector<8x256xf32>
    %105 = vector.extract_strided_slice %101 {offsets = [0, 1], sizes = [8, 255], strides = [1, 1]} : vector<8x256xf32> to vector<8x255xf32>
    %106 = vector.extract_strided_slice %101 {offsets = [0, 0], sizes = [8, 1], strides = [1, 1]} : vector<8x256xf32> to vector<8x1xf32>
    %107 = tpu.concatenate %105, %106 in 1 : vector<8x255xf32>, vector<8x1xf32> -> vector<8x256xf32>
    %108 = arith.select %4, %107, %104 : vector<8x256xi1>, vector<8x256xf32>
    %109 = arith.select %6, %104, %107 : vector<8x256xi1>, vector<8x256xf32>
    %110 = vector.extract_strided_slice %108 {offsets = [0, 240], sizes = [8, 16], strides = [1, 1]} : vector<8x256xf32> to vector<8x16xf32>
    %111 = vector.extract_strided_slice %108 {offsets = [0, 0], sizes = [8, 240], strides = [1, 1]} : vector<8x256xf32> to vector<8x240xf32>
    %112 = tpu.concatenate %110, %111 in 1 : vector<8x16xf32>, vector<8x240xf32> -> vector<8x256xf32>
    %113 = vector.extract_strided_slice %108 {offsets = [0, 16], sizes = [8, 240], strides = [1, 1]} : vector<8x256xf32> to vector<8x240xf32>
    %114 = vector.extract_strided_slice %108 {offsets = [0, 0], sizes = [8, 16], strides = [1, 1]} : vector<8x256xf32> to vector<8x16xf32>
    %115 = tpu.concatenate %113, %114 in 1 : vector<8x240xf32>, vector<8x16xf32> -> vector<8x256xf32>
    %116 = arith.select %8, %115, %112 : vector<8x256xi1>, vector<8x256xf32>
    %117 = arith.select %10, %112, %115 : vector<8x256xi1>, vector<8x256xf32>
    %c0_46 = arith.constant 0 : index
    %c0_47 = arith.constant 0 : index
    %c0_48 = arith.constant 0 : index
    %118 = vector.load %arg4[%c0_46, %c0_47, %c0_48] : memref<9x8x8xf32, #tpu.memory_space<vmem>>, vector<1x8x8xf32>
    %119 = vector.shape_cast %118 : vector<1x8x8xf32> to vector<8x8xf32>
    %cst_49 = arith.constant dense<0.000000e+00> : vector<8x256xf32>
    %120 = tpu.matmul %119, %116, %cst_49 {dimension_numbers = #tpu.dot_dimension_numbers<[1], [0], [0], [1], [0, 0, 1, 1], [], []>} : vector<8x8xf32>, vector<8x256xf32>, vector<8x256xf32> -> vector<8x256xf32>
    %c1_50 = arith.constant 1 : index
    %c0_51 = arith.constant 0 : index
    %c0_52 = arith.constant 0 : index
    %121 = vector.load %arg4[%c1_50, %c0_51, %c0_52] : memref<9x8x8xf32, #tpu.memory_space<vmem>>, vector<1x8x8xf32>
    %122 = vector.shape_cast %121 : vector<1x8x8xf32> to vector<8x8xf32>
    %cst_53 = arith.constant dense<0.000000e+00> : vector<8x256xf32>
    %123 = tpu.matmul %122, %108, %cst_53 {dimension_numbers = #tpu.dot_dimension_numbers<[1], [0], [0], [1], [0, 0, 1, 1], [], []>} : vector<8x8xf32>, vector<8x256xf32>, vector<8x256xf32> -> vector<8x256xf32>
    %124 = arith.addf %120, %123 : vector<8x256xf32>
    %c2_54 = arith.constant 2 : index
    %c0_55 = arith.constant 0 : index
    %c0_56 = arith.constant 0 : index
    %125 = vector.load %arg4[%c2_54, %c0_55, %c0_56] : memref<9x8x8xf32, #tpu.memory_space<vmem>>, vector<1x8x8xf32>
    %126 = vector.shape_cast %125 : vector<1x8x8xf32> to vector<8x8xf32>
    %cst_57 = arith.constant dense<0.000000e+00> : vector<8x256xf32>
    %127 = tpu.matmul %126, %117, %cst_57 {dimension_numbers = #tpu.dot_dimension_numbers<[1], [0], [0], [1], [0, 0, 1, 1], [], []>} : vector<8x8xf32>, vector<8x256xf32>, vector<8x256xf32> -> vector<8x256xf32>
    %128 = arith.addf %124, %127 : vector<8x256xf32>
    %129 = vector.extract_strided_slice %101 {offsets = [0, 240], sizes = [8, 16], strides = [1, 1]} : vector<8x256xf32> to vector<8x16xf32>
    %130 = vector.extract_strided_slice %101 {offsets = [0, 0], sizes = [8, 240], strides = [1, 1]} : vector<8x256xf32> to vector<8x240xf32>
    %131 = tpu.concatenate %129, %130 in 1 : vector<8x16xf32>, vector<8x240xf32> -> vector<8x256xf32>
    %132 = vector.extract_strided_slice %101 {offsets = [0, 16], sizes = [8, 240], strides = [1, 1]} : vector<8x256xf32> to vector<8x240xf32>
    %133 = vector.extract_strided_slice %101 {offsets = [0, 0], sizes = [8, 16], strides = [1, 1]} : vector<8x256xf32> to vector<8x16xf32>
    %134 = tpu.concatenate %132, %133 in 1 : vector<8x240xf32>, vector<8x16xf32> -> vector<8x256xf32>
    %135 = arith.select %8, %134, %131 : vector<8x256xi1>, vector<8x256xf32>
    %136 = arith.select %10, %131, %134 : vector<8x256xi1>, vector<8x256xf32>
    %c3_58 = arith.constant 3 : index
    %c0_59 = arith.constant 0 : index
    %c0_60 = arith.constant 0 : index
    %137 = vector.load %arg4[%c3_58, %c0_59, %c0_60] : memref<9x8x8xf32, #tpu.memory_space<vmem>>, vector<1x8x8xf32>
    %138 = vector.shape_cast %137 : vector<1x8x8xf32> to vector<8x8xf32>
    %cst_61 = arith.constant dense<0.000000e+00> : vector<8x256xf32>
    %139 = tpu.matmul %138, %135, %cst_61 {dimension_numbers = #tpu.dot_dimension_numbers<[1], [0], [0], [1], [0, 0, 1, 1], [], []>} : vector<8x8xf32>, vector<8x256xf32>, vector<8x256xf32> -> vector<8x256xf32>
    %140 = arith.addf %128, %139 : vector<8x256xf32>
    %c4_62 = arith.constant 4 : index
    %c0_63 = arith.constant 0 : index
    %c0_64 = arith.constant 0 : index
    %141 = vector.load %arg4[%c4_62, %c0_63, %c0_64] : memref<9x8x8xf32, #tpu.memory_space<vmem>>, vector<1x8x8xf32>
    %142 = vector.shape_cast %141 : vector<1x8x8xf32> to vector<8x8xf32>
    %cst_65 = arith.constant dense<0.000000e+00> : vector<8x256xf32>
    %143 = tpu.matmul %142, %101, %cst_65 {dimension_numbers = #tpu.dot_dimension_numbers<[1], [0], [0], [1], [0, 0, 1, 1], [], []>} : vector<8x8xf32>, vector<8x256xf32>, vector<8x256xf32> -> vector<8x256xf32>
    %144 = arith.addf %140, %143 : vector<8x256xf32>
    %c5_66 = arith.constant 5 : index
    %c0_67 = arith.constant 0 : index
    %c0_68 = arith.constant 0 : index
    %145 = vector.load %arg4[%c5_66, %c0_67, %c0_68] : memref<9x8x8xf32, #tpu.memory_space<vmem>>, vector<1x8x8xf32>
    %146 = vector.shape_cast %145 : vector<1x8x8xf32> to vector<8x8xf32>
    %cst_69 = arith.constant dense<0.000000e+00> : vector<8x256xf32>
    %147 = tpu.matmul %146, %136, %cst_69 {dimension_numbers = #tpu.dot_dimension_numbers<[1], [0], [0], [1], [0, 0, 1, 1], [], []>} : vector<8x8xf32>, vector<8x256xf32>, vector<8x256xf32> -> vector<8x256xf32>
    %148 = arith.addf %144, %147 : vector<8x256xf32>
    %149 = vector.extract_strided_slice %109 {offsets = [0, 240], sizes = [8, 16], strides = [1, 1]} : vector<8x256xf32> to vector<8x16xf32>
    %150 = vector.extract_strided_slice %109 {offsets = [0, 0], sizes = [8, 240], strides = [1, 1]} : vector<8x256xf32> to vector<8x240xf32>
    %151 = tpu.concatenate %149, %150 in 1 : vector<8x16xf32>, vector<8x240xf32> -> vector<8x256xf32>
    %152 = vector.extract_strided_slice %109 {offsets = [0, 16], sizes = [8, 240], strides = [1, 1]} : vector<8x256xf32> to vector<8x240xf32>
    %153 = vector.extract_strided_slice %109 {offsets = [0, 0], sizes = [8, 16], strides = [1, 1]} : vector<8x256xf32> to vector<8x16xf32>
    %154 = tpu.concatenate %152, %153 in 1 : vector<8x240xf32>, vector<8x16xf32> -> vector<8x256xf32>
    %155 = arith.select %8, %154, %151 : vector<8x256xi1>, vector<8x256xf32>
    %156 = arith.select %10, %151, %154 : vector<8x256xi1>, vector<8x256xf32>
    %c6_70 = arith.constant 6 : index
    %c0_71 = arith.constant 0 : index
    %c0_72 = arith.constant 0 : index
    %157 = vector.load %arg4[%c6_70, %c0_71, %c0_72] : memref<9x8x8xf32, #tpu.memory_space<vmem>>, vector<1x8x8xf32>
    %158 = vector.shape_cast %157 : vector<1x8x8xf32> to vector<8x8xf32>
    %cst_73 = arith.constant dense<0.000000e+00> : vector<8x256xf32>
    %159 = tpu.matmul %158, %155, %cst_73 {dimension_numbers = #tpu.dot_dimension_numbers<[1], [0], [0], [1], [0, 0, 1, 1], [], []>} : vector<8x8xf32>, vector<8x256xf32>, vector<8x256xf32> -> vector<8x256xf32>
    %160 = arith.addf %148, %159 : vector<8x256xf32>
    %c7_74 = arith.constant 7 : index
    %c0_75 = arith.constant 0 : index
    %c0_76 = arith.constant 0 : index
    %161 = vector.load %arg4[%c7_74, %c0_75, %c0_76] : memref<9x8x8xf32, #tpu.memory_space<vmem>>, vector<1x8x8xf32>
    %162 = vector.shape_cast %161 : vector<1x8x8xf32> to vector<8x8xf32>
    %cst_77 = arith.constant dense<0.000000e+00> : vector<8x256xf32>
    %163 = tpu.matmul %162, %109, %cst_77 {dimension_numbers = #tpu.dot_dimension_numbers<[1], [0], [0], [1], [0, 0, 1, 1], [], []>} : vector<8x8xf32>, vector<8x256xf32>, vector<8x256xf32> -> vector<8x256xf32>
    %164 = arith.addf %160, %163 : vector<8x256xf32>
    %c8_78 = arith.constant 8 : index
    %c0_79 = arith.constant 0 : index
    %c0_80 = arith.constant 0 : index
    %165 = vector.load %arg4[%c8_78, %c0_79, %c0_80] : memref<9x8x8xf32, #tpu.memory_space<vmem>>, vector<1x8x8xf32>
    %166 = vector.shape_cast %165 : vector<1x8x8xf32> to vector<8x8xf32>
    %cst_81 = arith.constant dense<0.000000e+00> : vector<8x256xf32>
    %167 = tpu.matmul %166, %156, %cst_81 {dimension_numbers = #tpu.dot_dimension_numbers<[1], [0], [0], [1], [0, 0, 1, 1], [], []>} : vector<8x8xf32>, vector<8x256xf32>, vector<8x256xf32> -> vector<8x256xf32>
    %168 = arith.addf %164, %167 : vector<8x256xf32>
    %c0_82 = arith.constant 0 : index
    %c0_83 = arith.constant 0 : index
    %169 = vector.load %arg5[%c0_82, %c0_83] : memref<8x8xf32, #tpu.memory_space<vmem>>, vector<8x8xf32>
    %cst_84 = arith.constant dense<0.000000e+00> : vector<8x256xf32>
    %170 = tpu.matmul %169, %168, %cst_84 {dimension_numbers = #tpu.dot_dimension_numbers<[1], [0], [0], [1], [0, 0, 1, 1], [], []>} : vector<8x8xf32>, vector<8x256xf32>, vector<8x256xf32> -> vector<8x256xf32>
    %cst_85 = arith.constant dense<0.000000e+00> : vector<8xf32>
    %171 = vector.multi_reduction <add>, %170, %cst_85 [1] : vector<8x256xf32> to vector<8xf32>
    %172 = vector.shape_cast %171 : vector<8xf32> to vector<8x1xf32>
    %173 = vector.broadcast %172 : vector<8x1xf32> to vector<8x256xf32>
    %174 = arith.subf %168, %173 : vector<8x256xf32>
    %175 = arith.mulf %174, %174 : vector<8x256xf32>
    %cst_86 = arith.constant dense<0.000000e+00> : vector<8x256xf32>
    %176 = tpu.matmul %169, %175, %cst_86 {dimension_numbers = #tpu.dot_dimension_numbers<[1], [0], [0], [1], [0, 0, 1, 1], [], []>} : vector<8x8xf32>, vector<8x256xf32>, vector<8x256xf32> -> vector<8x256xf32>
    %cst_87 = arith.constant dense<0.000000e+00> : vector<8xf32>
    %177 = vector.multi_reduction <add>, %176, %cst_87 [1] : vector<8x256xf32> to vector<8xf32>
    %178 = vector.shape_cast %177 : vector<8xf32> to vector<8x1xf32>
    %c0_88 = arith.constant 0 : index
    %c0_89 = arith.constant 0 : index
    %179 = vector.load %arg8[%c0_88, %c0_89] : memref<8x1xf32, #tpu.memory_space<vmem>>, vector<8x1xf32>
    %cst_90 = arith.constant 9.99999974E-6 : f32
    %180 = vector.broadcast %cst_90 : f32 to vector<8x1xf32>
    %181 = arith.addf %178, %180 : vector<8x1xf32>
    %182 = math.rsqrt %181 : vector<8x1xf32>
    %183 = arith.mulf %179, %182 : vector<8x1xf32>
    %c0_91 = arith.constant 0 : index
    %c0_92 = arith.constant 0 : index
    %184 = vector.load %arg9[%c0_91, %c0_92] : memref<8x1xf32, #tpu.memory_space<vmem>>, vector<8x1xf32>
    %185 = arith.mulf %172, %183 : vector<8x1xf32>
    %186 = arith.subf %184, %185 : vector<8x1xf32>
    %187 = vector.broadcast %183 : vector<8x1xf32> to vector<8x256xf32>
    %188 = arith.mulf %168, %187 : vector<8x256xf32>
    %189 = vector.broadcast %186 : vector<8x1xf32> to vector<8x256xf32>
    %190 = arith.addf %188, %189 : vector<8x256xf32>
    %191 = arith.addf %190, %0 : vector<8x256xf32>
    %cst_93 = arith.constant 0.000000e+00 : f32
    %192 = vector.broadcast %cst_93 : f32 to vector<8x256xf32>
    %193 = arith.maximumf %191, %192 : vector<8x256xf32>
    %c0_94 = arith.constant 0 : index
    %c0_95 = arith.constant 0 : index
    %194 = vector.load %arg10[%c0_94, %c0_95] : memref<8x256xf32, #tpu.memory_space<vmem>>, vector<8x256xf32>
    tpu.vector_store %arg10[%c0_94, %c0_95], %193 {strides = array<i32>} : memref<8x256xf32, #tpu.memory_space<vmem>>, vector<8x256xf32>,
    return
  }
}

</mosaic_0001>

<llo_original>
// kernel: tile.25
$region0: #{tile.25}
  %s0 = inlined_call_operand.vmem [shape: s32[16,16], index: 0, kind: input, shape index: {}]
  %s1 = inlined_call_operand.vmem [shape: s32[256], index: 1, kind: output, shape index: {}]
  $region1: #{tile.25} parent=0
    #allocation0 [shape = 'u8[4096]{0}', space=vmem, size = 0x1000, scoped, tag = 'scoped mem for output reshape']
    %s2 = smov 3
    %v3 = vld [vmem:[%s0] ss:$8 sm:%s2]
    %vm4 = vcmask 130048
    %5 = vst.msk [vmem:[#allocation0] sm:$0x3] %vm4, %v3
    %s6 = scalar_lea.vmem %s0, 7
    %s7 = smov 3
    %v8 = vld [vmem:[%s6] ss:$8 sm:%s7]
    %9 = vrot.lane.b32.xlu0 %v8, 112
    %v10 = vpop.permute.xlu0 %9
    %vm11 = vcmask 1048448
    %12 = vst.msk [vmem:[#allocation0] sm:$0x3] %vm11, %v10
    %s13 = scalar_lea.vmem %s0, 6
    %s14 = smov 3
    %v15 = vld [vmem:[%s13] ss:$8 sm:%s14]
    %16 = vrot.lane.b32.xlu0 %v15, 96
    %v17 = vpop.permute.xlu0 %16
    %vm18 = vcmask 917248
    %19 = vst.msk [vmem:[#allocation0] sm:$0x3] %vm18, %v17
    %s20 = scalar_lea.vmem %s0, 5
    %s21 = smov 3
    %v22 = vld [vmem:[%s20] ss:$8 sm:%s21]
    %23 = vrot.lane.b32.xlu0 %v22, 80
    %v24 = vpop.permute.xlu0 %23
    %vm25 = vcmask 786048
    %26 = vst.msk [vmem:[#allocation0] sm:$0x3] %vm25, %v24
    %s27 = scalar_lea.vmem %s0, 4
    %s28 = smov 3
    %v29 = vld [vmem:[%s27] ss:$8 sm:%s28]
    %30 = vrot.lane.b32.xlu0 %v29, 64
    %v31 = vpop.permute.xlu0 %30
    %vm32 = vcmask 654848
    %33 = vst.msk [vmem:[#allocation0] sm:$0x3] %vm32, %v31
    %s34 = scalar_lea.vmem %s0, 3
    %s35 = smov 3
    %v36 = vld [vmem:[%s34] ss:$8 sm:%s35]
    %37 = vrot.lane.b32.xlu0 %v36, 48
    %v38 = vpop.permute.xlu0 %37
    %vm39 = vcmask 523648
    %40 = vst.msk [vmem:[#allocation0] sm:$0x3] %vm39, %v38
    %s41 = scalar_lea.vmem %s0, 2
    %s42 = smov 3
    %v43 = vld [vmem:[%s41] ss:$8 sm:%s42]
    %44 = vrot.lane.b32.xlu0 %v43, 32
    %v45 = vpop.permute.xlu0 %44
    %vm46 = vcmask 392448
    %47 = vst.msk [vmem:[#allocation0] sm:$0x3] %vm46, %v45
    %s48 = scalar_lea.vmem %s0, 1
    %s49 = smov 3
    %v50 = vld [vmem:[%s48] ss:$8 sm:%s49]
    %51 = vrot.lane.b32.xlu0 %v50, 16
    %v52 = vpop.permute.xlu0 %51
    %vm53 = vcmask 261248
    %54 = vst.msk [vmem:[#allocation0] sm:$0x3] %vm53, %v52
    %s56 = ssub.s32 4, 1
    %v57 = vld [vmem:[#allocation0] sm:%s56]
    %s59 = ssub.s32 4, 1
    %60 = vst [vmem:[%s1] sm:%s59] %v57

// kernel: tile.28
$region0: #{tile.28}
  #allocation0 [shape = 's32[1]{0}', space=sflag, size = 0x4, scoped, tag = 'scoped memory for tile.28']
  %s0 = inlined_call_operand.vmem [shape: f32[4], index: 0, kind: input, shape index: {}]
  %s1 = inlined_call_operand.vmem [shape: f32[2,1,1,4], index: 1, kind: output, shape index: {}]
  // Predicated region
  $region2: #{tile.28} parent=0 // pred_check
    _
  $region3: #{tile.28} parent=0 // pred_check_branch
    %3 = sbr.rel (0) target = $region5
  $region4: #{tile.28} parent=0 // pred_region
    _
  $region5: #{tile.28} parent=0 // pred_fallthru
    _
  %v4 = vld [vmem:[%s0] ss:$0 sm:$0xff]
  %5 = vst [vmem:[%s1] sm:$0x3] %v4

// kernel: tile.0
$region0: #{tile.0}
  %s0 = inlined_call_operand.vmem [shape: f32[2,1,1,4], index: 0, kind: input, shape index: {}]
  %s1 = inlined_call_operand.vmem [shape: f32[8,1], index: 1, kind: output, shape index: {}]
  $region1: #{tile.0} parent=0
    #allocation0 [shape = 'u8[4096]{0}', space=vmem, size = 0x1000, scoped, tag = 'scoped mem for input reshape']
    %s3 = ssub.s32 4, 1
    %v4 = vld [vmem:[%s0] sm:%s3]
    %5 = vst [vmem:[#allocation0] sm:%s3] %v4
    %v6 = vld [vmem:[#allocation0] sm:$0x3]
    %vm7 = vcmask 7168
    %8 = vst.msk [vmem:[%s1] ss:$4 sm:$0x3] %vm7, %v6
    %v9 = vld [vmem:[#allocation0] sm:$0x3]
    %10 = vrot.lane.b32.xlu0 %v9, 127
    %v11 = vpop.permute.xlu0 %10
    %vm12 = vcmask 7168
    %s13 = scalar_lea.vmem %s1, 1
    %14 = vst.msk [vmem:[%s13] ss:$4 sm:$0x3] %vm12, %v11
    %v15 = vld [vmem:[#allocation0] sm:$0x3]
    %16 = vrot.lane.b32.xlu0 %v15, 126
    %v17 = vpop.permute.xlu0 %16
    %vm18 = vcmask 7168
    %s19 = scalar_lea.vmem %s1, 2
    %20 = vst.msk [vmem:[%s19] ss:$4 sm:$0x3] %vm18, %v17
    %v21 = vld [vmem:[#allocation0] sm:$0x3]
    %22 = vrot.lane.b32.xlu0 %v21, 125
    %v23 = vpop.permute.xlu0 %22
    %vm24 = vcmask 7168
    %s25 = scalar_lea.vmem %s1, 3
    %26 = vst.msk [vmem:[%s25] ss:$4 sm:$0x3] %vm24, %v23

// kernel: res_block_standard.1
$region0: #{res_block_standard.1}
  #allocation0 [shape = 'u32[]', space=smem, size = 0x4, offset = 0x4, fixed_abs, tag = 'smem constant byte address 0x4 - core index']
  #allocation1 [shape = 'u32[72,128]{1,0:T(1,128)}', space=vmem, size = 0x9000, scoped, tag = 'internal scratch']
  %s0 = inlined_call_operand.vmem [shape: f32[8,256], index: 0, kind: input, shape index: {}]
  %s1 = inlined_call_operand.vmem [shape: s32[8,256], index: 1, kind: input, shape index: {}]
  %s2 = inlined_call_operand.vmem [shape: s32[8,256], index: 2, kind: input, shape index: {}]
  %s3 = inlined_call_operand.vmem [shape: f32[9,8,8], index: 3, kind: input, shape index: {}]
  %s4 = inlined_call_operand.vmem [shape: f32[9,8,8], index: 4, kind: input, shape index: {}]
  %s5 = inlined_call_operand.vmem [shape: f32[8,8], index: 5, kind: input, shape index: {}]
  %s6 = inlined_call_operand.vmem [shape: f32[8,1], index: 6, kind: input, shape index: {}]
  %s7 = inlined_call_operand.vmem [shape: f32[8,1], index: 7, kind: input, shape index: {}]
  %s8 = inlined_call_operand.vmem [shape: f32[8,1], index: 8, kind: input, shape index: {}]
  %s9 = inlined_call_operand.vmem [shape: f32[8,1], index: 9, kind: input, shape index: {}]
  %s10 = inlined_call_operand.vmem [shape: f32[8,256], index: 10, kind: output, shape index: {}]
  %s11 = sld [smem:[#allocation0]]
  $region50: #{res_block_standard.1} parent=0
    _
  %s13 = ssub.s32 1, %s11
  %s14 = scalar_select 0, %s13, %s11
  // Predicated region
  $region2: #{res_block_standard.1} parent=0 // pred_check
    _
  $region3: #{res_block_standard.1} parent=0 // pred_check_branch
    %16 = sbr.rel (0) target = $region5
  $region4: #{res_block_standard.1} parent=0 // pred_region
    _
  $region5: #{res_block_standard.1} parent=0 // pred_fallthru
    _
  // Predicated region
  $region6: #{res_block_standard.1} parent=0 // pred_check
    _
  $region7: #{res_block_standard.1} parent=0 // pred_check_branch
    %18 = sbr.rel (0) target = $region9
  $region8: #{res_block_standard.1} parent=0 // pred_region
    _
  $region9: #{res_block_standard.1} parent=0 // pred_fallthru
    _
  // Predicated region
  $region10: #{res_block_standard.1} parent=0 // pred_check
    _
  $region11: #{res_block_standard.1} parent=0 // pred_check_branch
    %20 = sbr.rel (0) target = $region13
  $region12: #{res_block_standard.1} parent=0 // pred_region
    _
  $region13: #{res_block_standard.1} parent=0 // pred_fallthru
    _
  // Predicated region
  $region14: #{res_block_standard.1} parent=0 // pred_check
    _
  $region15: #{res_block_standard.1} parent=0 // pred_check_branch
    %22 = sbr.rel (0) target = $region17
  $region16: #{res_block_standard.1} parent=0 // pred_region
    _
  $region17: #{res_block_standard.1} parent=0 // pred_fallthru
    _
  // Predicated region
  $region18: #{res_block_standard.1} parent=0 // pred_check
    _
  $region19: #{res_block_standard.1} parent=0 // pred_check_branch
    %24 = sbr.rel (0) target = $region21
  $region20: #{res_block_standard.1} parent=0 // pred_region
    _
  $region21: #{res_block_standard.1} parent=0 // pred_fallthru
    _
  // Predicated region
  $region22: #{res_block_standard.1} parent=0 // pred_check
    _
  $region23: #{res_block_standard.1} parent=0 // pred_check_branch
    %26 = sbr.rel (0) target = $region25
  $region24: #{res_block_standard.1} parent=0 // pred_region
    _
  $region25: #{res_block_standard.1} parent=0 // pred_fallthru
    _
  // Predicated region
  $region26: #{res_block_standard.1} parent=0 // pred_check
    _
  $region27: #{res_block_standard.1} parent=0 // pred_check_branch
    %28 = sbr.rel (0) target = $region29
  $region28: #{res_block_standard.1} parent=0 // pred_region
    _
  $region29: #{res_block_standard.1} parent=0 // pred_fallthru
    _
  // Predicated region
  $region30: #{res_block_standard.1} parent=0 // pred_check
    _
  $region31: #{res_block_standard.1} parent=0 // pred_check_branch
    %30 = sbr.rel (0) target = $region33
  $region32: #{res_block_standard.1} parent=0 // pred_region
    _
  $region33: #{res_block_standard.1} parent=0 // pred_fallthru
    _
  // Predicated region
  $region34: #{res_block_standard.1} parent=0 // pred_check
    _
  $region35: #{res_block_standard.1} parent=0 // pred_check_branch
    %32 = sbr.rel (0) target = $region37
  $region36: #{res_block_standard.1} parent=0 // pred_region
    _
  $region37: #{res_block_standard.1} parent=0 // pred_fallthru
    _
  // Predicated region
  $region38: #{res_block_standard.1} parent=0 // pred_check
    _
  $region39: #{res_block_standard.1} parent=0 // pred_check_branch
    %34 = sbr.rel (0) target = $region41
  $region40: #{res_block_standard.1} parent=0 // pred_region
    _
  $region41: #{res_block_standard.1} parent=0 // pred_fallthru
    _
  %v35 = vld [vmem:[%s0] sm:$0xff]
  %v36 = vld [vmem:[%s0 + $0x8] sm:$0xff]
  %v37 = vld [vmem:[%s1] sm:$0xff]
  %v38 = vld [vmem:[%s1 + $0x8] sm:$0xff]
  %v39 = vld [vmem:[%s2] sm:$0xff]
  %v40 = vld [vmem:[%s2 + $0x8] sm:$0xff]
  %vm41 = vcmp.eq.s32.totalorder %v37, 0
  %vm42 = vcmp.eq.s32.totalorder %v38, 0
  %vm43 = vcmp.eq.s32.totalorder %v37, 15
  %vm44 = vcmp.eq.s32.totalorder %v38, 15
  %vm45 = vcmp.eq.s32.totalorder %v39, 0
  %vm46 = vcmp.eq.s32.totalorder %v40, 0
  %vm47 = vcmp.eq.s32.totalorder %v39, 15
  %vm48 = vcmp.eq.s32.totalorder %v40, 15
  %50 = vrot.lane.b32.xlu0 %v36, 1
  %v51 = vpop.permute.xlu0 %50
  %54 = vrot.lane.b32.xlu0 %v35, 1
  %v55 = vpop.permute.xlu0 %54
  %vm56 = vcmask 7168
  %v57 = vsel %vm56, %v55, %v51
  %v60 = vsel %vm56, %v51, %v55
  %61 = vrot.lane.b32.xlu0 %v35, 127
  %v62 = vpop.permute.xlu0 %61
  %63 = vrot.lane.b32.xlu0 %v36, 127
  %v64 = vpop.permute.xlu0 %63
  %vm65 = vcmask 1039360
  %v66 = vsel %vm65, %v62, %v64
  %v70 = vsel %vm65, %v64, %v62
  %v71 = vsel %vm41, %v66, %v60
  %v72 = vsel %vm42, %v70, %v57
  %v73 = vsel %vm43, %v60, %v66
  %v74 = vsel %vm44, %v57, %v70
  %76 = vrot.lane.b32.xlu0 %v72, 16
  %v77 = vpop.permute.xlu0 %76
  %80 = vrot.lane.b32.xlu0 %v71, 16
  %v81 = vpop.permute.xlu0 %80
  %vm82 = vcmask 130048
  %v83 = vsel %vm82, %v81, %v77
  %v86 = vsel %vm82, %v77, %v81
  %87 = vrot.lane.b32.xlu0 %v71, 112
  %v88 = vpop.permute.xlu0 %87
  %89 = vrot.lane.b32.xlu0 %v72, 112
  %v90 = vpop.permute.xlu0 %89
  %vm91 = vcmask 916480
  %v92 = vsel %vm91, %v88, %v90
  %v96 = vsel %vm91, %v90, %v88
  %v97 = vsel %vm45, %v92, %v86
  %v98 = vsel %vm46, %v96, %v83
  %v99 = vsel %vm47, %v86, %v92
  %v100 = vsel %vm48, %v83, %v96
  %v101 = vld [vmem:[%s3] sm:$0xff]
  %s102 = scalar_lea.vmem %s3, 8
  %v103 = vld [vmem:[%s102] sm:$0xff]
  %vm104 = vcmask 64512
  %v106 = vsel %vm104, %v103, 0
  %108 = vmatpush.msra.mxu0 0.0
  %109 = vmatpush.msra.mxu0 0.0
  %110 = vmatpush.msra.mxu0 0.0
  %111 = vmatpush.msra.mxu0 0.0
  %112 = vmatpush.msra.mxu0 0.0
  %113 = vmatpush.msra.mxu0 0.0
  %114 = vmatpush.msra.mxu0 0.0
  %115 = vmatpush.msra.mxu0 0.0
  %116 = vmatpush.msra.mxu0 0.0
  %117 = vmatpush.msra.mxu0 0.0
  %118 = vmatpush.msra.mxu0 0.0
  %119 = vmatpush.msra.mxu0 0.0
  %120 = vmatpush.msra.mxu0 0.0
  %121 = vmatpush.msra.mxu0 0.0
  %122 = vmatpush.msra.mxu0 0.0
  %123 = vmatpush.msra.mxu0 %v71
  %124 = vmatmul.f32.gmra.mxu0 %v106
  %v125 = vpop.f32.mrf.mxu0
  %v126 = vadd.f32 0.0, %v125
  %127 = vdwg.mxu0
  %128 = vmatpush.msra.mxu0 0.0
  %129 = vmatpush.msra.mxu0 0.0
  %130 = vmatpush.msra.mxu0 0.0
  %131 = vmatpush.msra.mxu0 0.0
  %132 = vmatpush.msra.mxu0 0.0
  %133 = vmatpush.msra.mxu0 0.0
  %134 = vmatpush.msra.mxu0 0.0
  %135 = vmatpush.msra.mxu0 0.0
  %136 = vmatpush.msra.mxu0 0.0
  %137 = vmatpush.msra.mxu0 0.0
  %138 = vmatpush.msra.mxu0 0.0
  %139 = vmatpush.msra.mxu0 0.0
  %140 = vmatpush.msra.mxu0 0.0
  %141 = vmatpush.msra.mxu0 0.0
  %142 = vmatpush.msra.mxu0 0.0
  %143 = vmatpush.msra.mxu0 %v72
  %144 = vmatmul.f32.gmra.mxu0 %v106
  %v145 = vpop.f32.mrf.mxu0
  %v146 = vadd.f32 0.0, %v145
  %147 = vdwg.mxu0
  %v149 = vsel %vm104, %v101, 0
  %151 = vmatpush.msra.mxu0 0.0
  %152 = vmatpush.msra.mxu0 0.0
  %153 = vmatpush.msra.mxu0 0.0
  %154 = vmatpush.msra.mxu0 0.0
  %155 = vmatpush.msra.mxu0 0.0
  %156 = vmatpush.msra.mxu0 0.0
  %157 = vmatpush.msra.mxu0 0.0
  %158 = vmatpush.msra.mxu0 0.0
  %159 = vmatpush.msra.mxu0 0.0
  %160 = vmatpush.msra.mxu0 0.0
  %161 = vmatpush.msra.mxu0 0.0
  %162 = vmatpush.msra.mxu0 0.0
  %163 = vmatpush.msra.mxu0 0.0
  %164 = vmatpush.msra.mxu0 0.0
  %165 = vmatpush.msra.mxu0 0.0
  %166 = vmatpush.msra.mxu0 %v97
  %167 = vmatmul.f32.gmra.mxu0 %v149
  %v168 = vpop.f32.mrf.mxu0
  %v169 = vadd.f32 %v126, %v168
  %170 = vdwg.mxu0
  %171 = vmatpush.msra.mxu0 0.0
  %172 = vmatpush.msra.mxu0 0.0
  %173 = vmatpush.msra.mxu0 0.0
  %174 = vmatpush.msra.mxu0 0.0
  %175 = vmatpush.msra.mxu0 0.0
  %176 = vmatpush.msra.mxu0 0.0
  %177 = vmatpush.msra.mxu0 0.0
  %178 = vmatpush.msra.mxu0 0.0
  %179 = vmatpush.msra.mxu0 0.0
  %180 = vmatpush.msra.mxu0 0.0
  %181 = vmatpush.msra.mxu0 0.0
  %182 = vmatpush.msra.mxu0 0.0
  %183 = vmatpush.msra.mxu0 0.0
  %184 = vmatpush.msra.mxu0 0.0
  %185 = vmatpush.msra.mxu0 0.0
  %186 = vmatpush.msra.mxu0 %v98
  %187 = vmatmul.f32.gmra.mxu0 %v149
  %v188 = vpop.f32.mrf.mxu0
  %v189 = vadd.f32 %v146, %v188
  %190 = vdwg.mxu0
  %s191 = scalar_lea.vmem %s3, 16
  %v192 = vld [vmem:[%s191] sm:$0xff]
  %v194 = vsel %vm104, %v192, 0
  %196 = vmatpush.msra.mxu0 0.0
  %197 = vmatpush.msra.mxu0 0.0
  %198 = vmatpush.msra.mxu0 0.0
  %199 = vmatpush.msra.mxu0 0.0
  %200 = vmatpush.msra.mxu0 0.0
  %201 = vmatpush.msra.mxu0 0.0
  %202 = vmatpush.msra.mxu0 0.0
  %203 = vmatpush.msra.mxu0 0.0
  %204 = vmatpush.msra.mxu0 0.0
  %205 = vmatpush.msra.mxu0 0.0
  %206 = vmatpush.msra.mxu0 0.0
  %207 = vmatpush.msra.mxu0 0.0
  %208 = vmatpush.msra.mxu0 0.0
  %209 = vmatpush.msra.mxu0 0.0
  %210 = vmatpush.msra.mxu0 0.0
  %211 = vmatpush.msra.mxu0 %v99
  %212 = vmatmul.f32.gmra.mxu0 %v194
  %v213 = vpop.f32.mrf.mxu0
  %v214 = vadd.f32 0.0, %v213
  %215 = vdwg.mxu0
  %216 = vmatpush.msra.mxu0 0.0
  %217 = vmatpush.msra.mxu0 0.0
  %218 = vmatpush.msra.mxu0 0.0
  %219 = vmatpush.msra.mxu0 0.0
  %220 = vmatpush.msra.mxu0 0.0
  %221 = vmatpush.msra.mxu0 0.0
  %222 = vmatpush.msra.mxu0 0.0
  %223 = vmatpush.msra.mxu0 0.0
  %224 = vmatpush.msra.mxu0 0.0
  %225 = vmatpush.msra.mxu0 0.0
  %226 = vmatpush.msra.mxu0 0.0
  %227 = vmatpush.msra.mxu0 0.0
  %228 = vmatpush.msra.mxu0 0.0
  %229 = vmatpush.msra.mxu0 0.0
  %230 = vmatpush.msra.mxu0 0.0
  %231 = vmatpush.msra.mxu0 %v100
  %232 = vmatmul.f32.gmra.mxu0 %v194
  %v233 = vpop.f32.mrf.mxu0
  %v234 = vadd.f32 0.0, %v233
  %235 = vdwg.mxu0
  %v236 = vadd.f32 %v169, %v214
  %v237 = vadd.f32 %v189, %v234
  %238 = vrot.lane.b32.xlu0 %v36, 16
  %v239 = vpop.permute.xlu0 %238
  %241 = vrot.lane.b32.xlu0 %v35, 16
  %v242 = vpop.permute.xlu0 %241
  %v243 = vsel %vm82, %v242, %v239
  %v246 = vsel %vm82, %v239, %v242
  %247 = vrot.lane.b32.xlu0 %v35, 112
  %v248 = vpop.permute.xlu0 %247
  %249 = vrot.lane.b32.xlu0 %v36, 112
  %v250 = vpop.permute.xlu0 %249
  %v251 = vsel %vm91, %v248, %v250
  %v255 = vsel %vm91, %v250, %v248
  %v256 = vsel %vm45, %v251, %v246
  %v257 = vsel %vm46, %v255, %v243
  %v258 = vsel %vm47, %v246, %v251
  %v259 = vsel %vm48, %v243, %v255
  %s260 = scalar_lea.vmem %s3, 24
  %v261 = vld [vmem:[%s260] sm:$0xff]
  %v263 = vsel %vm104, %v261, 0
  %265 = vmatpush.msra.mxu0 0.0
  %266 = vmatpush.msra.mxu0 0.0
  %267 = vmatpush.msra.mxu0 0.0
  %268 = vmatpush.msra.mxu0 0.0
  %269 = vmatpush.msra.mxu0 0.0
  %270 = vmatpush.msra.mxu0 0.0
  %271 = vmatpush.msra.mxu0 0.0
  %272 = vmatpush.msra.mxu0 0.0
  %273 = vmatpush.msra.mxu0 0.0
  %274 = vmatpush.msra.mxu0 0.0
  %275 = vmatpush.msra.mxu0 0.0
  %276 = vmatpush.msra.mxu0 0.0
  %277 = vmatpush.msra.mxu0 0.0
  %278 = vmatpush.msra.mxu0 0.0
  %279 = vmatpush.msra.mxu0 0.0
  %280 = vmatpush.msra.mxu0 %v256
  %281 = vmatmul.f32.gmra.mxu0 %v263
  %v282 = vpop.f32.mrf.mxu0
  %v283 = vadd.f32 0.0, %v282
  %284 = vdwg.mxu0
  %285 = vmatpush.msra.mxu0 0.0
  %286 = vmatpush.msra.mxu0 0.0
  %287 = vmatpush.msra.mxu0 0.0
  %288 = vmatpush.msra.mxu0 0.0
  %289 = vmatpush.msra.mxu0 0.0
  %290 = vmatpush.msra.mxu0 0.0
  %291 = vmatpush.msra.mxu0 0.0
  %292 = vmatpush.msra.mxu0 0.0
  %293 = vmatpush.msra.mxu0 0.0
  %294 = vmatpush.msra.mxu0 0.0
  %295 = vmatpush.msra.mxu0 0.0
  %296 = vmatpush.msra.mxu0 0.0
  %297 = vmatpush.msra.mxu0 0.0
  %298 = vmatpush.msra.mxu0 0.0
  %299 = vmatpush.msra.mxu0 0.0
  %300 = vmatpush.msra.mxu0 %v257
  %301 = vmatmul.f32.gmra.mxu0 %v263
  %v302 = vpop.f32.mrf.mxu0
  %v303 = vadd.f32 0.0, %v302
  %304 = vdwg.mxu0
  %v305 = vadd.f32 %v236, %v283
  %v306 = vadd.f32 %v237, %v303
  %s307 = scalar_lea.vmem %s3, 32
  %v308 = vld [vmem:[%s307] sm:$0xff]
  %v310 = vsel %vm104, %v308, 0
  %312 = vmatpush.msra.mxu0 0.0
  %313 = vmatpush.msra.mxu0 0.0
  %314 = vmatpush.msra.mxu0 0.0
  %315 = vmatpush.msra.mxu0 0.0
  %316 = vmatpush.msra.mxu0 0.0
  %317 = vmatpush.msra.mxu0 0.0
  %318 = vmatpush.msra.mxu0 0.0
  %319 = vmatpush.msra.mxu0 0.0
  %320 = vmatpush.msra.mxu0 0.0
  %321 = vmatpush.msra.mxu0 0.0
  %322 = vmatpush.msra.mxu0 0.0
  %323 = vmatpush.msra.mxu0 0.0
  %324 = vmatpush.msra.mxu0 0.0
  %325 = vmatpush.msra.mxu0 0.0
  %326 = vmatpush.msra.mxu0 0.0
  %327 = vmatpush.msra.mxu0 %v35
  %328 = vmatmul.f32.gmra.mxu0 %v310
  %v329 = vpop.f32.mrf.mxu0
  %v330 = vadd.f32 0.0, %v329
  %331 = vdwg.mxu0
  %332 = vmatpush.msra.mxu0 0.0
  %333 = vmatpush.msra.mxu0 0.0
  %334 = vmatpush.msra.mxu0 0.0
  %335 = vmatpush.msra.mxu0 0.0
  %336 = vmatpush.msra.mxu0 0.0
  %337 = vmatpush.msra.mxu0 0.0
  %338 = vmatpush.msra.mxu0 0.0
  %339 = vmatpush.msra.mxu0 0.0
  %340 = vmatpush.msra.mxu0 0.0
  %341 = vmatpush.msra.mxu0 0.0
  %342 = vmatpush.msra.mxu0 0.0
  %343 = vmatpush.msra.mxu0 0.0
  %344 = vmatpush.msra.mxu0 0.0
  %345 = vmatpush.msra.mxu0 0.0
  %346 = vmatpush.msra.mxu0 0.0
  %347 = vmatpush.msra.mxu0 %v36
  %348 = vmatmul.f32.gmra.mxu0 %v310
  %v349 = vpop.f32.mrf.mxu0
  %v350 = vadd.f32 0.0, %v349
  %351 = vdwg.mxu0
  %v352 = vadd.f32 %v305, %v330
  %v353 = vadd.f32 %v306, %v350
  %s354 = scalar_lea.vmem %s3, 40
  %v355 = vld [vmem:[%s354] sm:$0xff]
  %v357 = vsel %vm104, %v355, 0
  %359 = vmatpush.msra.mxu0 0.0
  %360 = vmatpush.msra.mxu0 0.0
  %361 = vmatpush.msra.mxu0 0.0
  %362 = vmatpush.msra.mxu0 0.0
  %363 = vmatpush.msra.mxu0 0.0
  %364 = vmatpush.msra.mxu0 0.0
  %365 = vmatpush.msra.mxu0 0.0
  %366 = vmatpush.msra.mxu0 0.0
  %367 = vmatpush.msra.mxu0 0.0
  %368 = vmatpush.msra.mxu0 0.0
  %369 = vmatpush.msra.mxu0 0.0
  %370 = vmatpush.msra.mxu0 0.0
  %371 = vmatpush.msra.mxu0 0.0
  %372 = vmatpush.msra.mxu0 0.0
  %373 = vmatpush.msra.mxu0 0.0
  %374 = vmatpush.msra.mxu0 %v258
  %375 = vmatmul.f32.gmra.mxu0 %v357
  %v376 = vpop.f32.mrf.mxu0
  %v377 = vadd.f32 0.0, %v376
  %378 = vdwg.mxu0
  %379 = vmatpush.msra.mxu0 0.0
  %380 = vmatpush.msra.mxu0 0.0
  %381 = vmatpush.msra.mxu0 0.0
  %382 = vmatpush.msra.mxu0 0.0
  %383 = vmatpush.msra.mxu0 0.0
  %384 = vmatpush.msra.mxu0 0.0
  %385 = vmatpush.msra.mxu0 0.0
  %386 = vmatpush.msra.mxu0 0.0
  %387 = vmatpush.msra.mxu0 0.0
  %388 = vmatpush.msra.mxu0 0.0
  %389 = vmatpush.msra.mxu0 0.0
  %390 = vmatpush.msra.mxu0 0.0
  %391 = vmatpush.msra.mxu0 0.0
  %392 = vmatpush.msra.mxu0 0.0
  %393 = vmatpush.msra.mxu0 0.0
  %394 = vmatpush.msra.mxu0 %v259
  %395 = vmatmul.f32.gmra.mxu0 %v357
  %v396 = vpop.f32.mrf.mxu0
  %v397 = vadd.f32 0.0, %v396
  %398 = vdwg.mxu0
  %v399 = vadd.f32 %v352, %v377
  %v400 = vadd.f32 %v353, %v397
  %402 = vrot.lane.b32.xlu0 %v74, 16
  %v403 = vpop.permute.xlu0 %402
  %406 = vrot.lane.b32.xlu0 %v73, 16
  %v407 = vpop.permute.xlu0 %406
  %v408 = vsel %vm82, %v407, %v403
  %v411 = vsel %vm82, %v403, %v407
  %412 = vrot.lane.b32.xlu0 %v73, 112
  %v413 = vpop.permute.xlu0 %412
  %414 = vrot.lane.b32.xlu0 %v74, 112
  %v415 = vpop.permute.xlu0 %414
  %v416 = vsel %vm91, %v413, %v415
  %v420 = vsel %vm91, %v415, %v413
  %v421 = vsel %vm45, %v416, %v411
  %v422 = vsel %vm46, %v420, %v408
  %v423 = vsel %vm47, %v411, %v416
  %v424 = vsel %vm48, %v408, %v420
  %s425 = scalar_lea.vmem %s3, 48
  %v426 = vld [vmem:[%s425] sm:$0xff]
  %v428 = vsel %vm104, %v426, 0
  %430 = vmatpush.msra.mxu0 0.0
  %431 = vmatpush.msra.mxu0 0.0
  %432 = vmatpush.msra.mxu0 0.0
  %433 = vmatpush.msra.mxu0 0.0
  %434 = vmatpush.msra.mxu0 0.0
  %435 = vmatpush.msra.mxu0 0.0
  %436 = vmatpush.msra.mxu0 0.0
  %437 = vmatpush.msra.mxu0 0.0
  %438 = vmatpush.msra.mxu0 0.0
  %439 = vmatpush.msra.mxu0 0.0
  %440 = vmatpush.msra.mxu0 0.0
  %441 = vmatpush.msra.mxu0 0.0
  %442 = vmatpush.msra.mxu0 0.0
  %443 = vmatpush.msra.mxu0 0.0
  %444 = vmatpush.msra.mxu0 0.0
  %445 = vmatpush.msra.mxu0 %v421
  %446 = vmatmul.f32.gmra.mxu0 %v428
  %v447 = vpop.f32.mrf.mxu0
  %v448 = vadd.f32 0.0, %v447
  %449 = vdwg.mxu0
  %450 = vmatpush.msra.mxu0 0.0
  %451 = vmatpush.msra.mxu0 0.0
  %452 = vmatpush.msra.mxu0 0.0
  %453 = vmatpush.msra.mxu0 0.0
  %454 = vmatpush.msra.mxu0 0.0
  %455 = vmatpush.msra.mxu0 0.0
  %456 = vmatpush.msra.mxu0 0.0
  %457 = vmatpush.msra.mxu0 0.0
  %458 = vmatpush.msra.mxu0 0.0
  %459 = vmatpush.msra.mxu0 0.0
  %460 = vmatpush.msra.mxu0 0.0
  %461 = vmatpush.msra.mxu0 0.0
  %462 = vmatpush.msra.mxu0 0.0
  %463 = vmatpush.msra.mxu0 0.0
  %464 = vmatpush.msra.mxu0 0.0
  %465 = vmatpush.msra.mxu0 %v422
  %466 = vmatmul.f32.gmra.mxu0 %v428
  %v467 = vpop.f32.mrf.mxu0
  %v468 = vadd.f32 0.0, %v467
  %469 = vdwg.mxu0
  %v470 = vadd.f32 %v399, %v448
  %v471 = vadd.f32 %v400, %v468
  %s472 = scalar_lea.vmem %s3, 56
  %v473 = vld [vmem:[%s472] sm:$0xff]
  %v475 = vsel %vm104, %v473, 0
  %477 = vmatpush.msra.mxu0 0.0
  %478 = vmatpush.msra.mxu0 0.0
  %479 = vmatpush.msra.mxu0 0.0
  %480 = vmatpush.msra.mxu0 0.0
  %481 = vmatpush.msra.mxu0 0.0
  %482 = vmatpush.msra.mxu0 0.0
  %483 = vmatpush.msra.mxu0 0.0
  %484 = vmatpush.msra.mxu0 0.0
  %485 = vmatpush.msra.mxu0 0.0
  %486 = vmatpush.msra.mxu0 0.0
  %487 = vmatpush.msra.mxu0 0.0
  %488 = vmatpush.msra.mxu0 0.0
  %489 = vmatpush.msra.mxu0 0.0
  %490 = vmatpush.msra.mxu0 0.0
  %491 = vmatpush.msra.mxu0 0.0
  %492 = vmatpush.msra.mxu0 %v73
  %493 = vmatmul.f32.gmra.mxu0 %v475
  %v494 = vpop.f32.mrf.mxu0
  %v495 = vadd.f32 0.0, %v494
  %496 = vdwg.mxu0
  %497 = vmatpush.msra.mxu0 0.0
  %498 = vmatpush.msra.mxu0 0.0
  %499 = vmatpush.msra.mxu0 0.0
  %500 = vmatpush.msra.mxu0 0.0
  %501 = vmatpush.msra.mxu0 0.0
  %502 = vmatpush.msra.mxu0 0.0
  %503 = vmatpush.msra.mxu0 0.0
  %504 = vmatpush.msra.mxu0 0.0
  %505 = vmatpush.msra.mxu0 0.0
  %506 = vmatpush.msra.mxu0 0.0
  %507 = vmatpush.msra.mxu0 0.0
  %508 = vmatpush.msra.mxu0 0.0
  %509 = vmatpush.msra.mxu0 0.0
  %510 = vmatpush.msra.mxu0 0.0
  %511 = vmatpush.msra.mxu0 0.0
  %512 = vmatpush.msra.mxu0 %v74
  %513 = vmatmul.f32.gmra.mxu0 %v475
  %v514 = vpop.f32.mrf.mxu0
  %v515 = vadd.f32 0.0, %v514
  %516 = vdwg.mxu0
  %v517 = vadd.f32 %v470, %v495
  %v518 = vadd.f32 %v471, %v515
  %s519 = scalar_lea.vmem %s3, 64
  %v520 = vld [vmem:[%s519] sm:$0xff]
  %v522 = vsel %vm104, %v520, 0
  %524 = vmatpush.msra.mxu0 0.0
  %525 = vmatpush.msra.mxu0 0.0
  %526 = vmatpush.msra.mxu0 0.0
  %527 = vmatpush.msra.mxu0 0.0
  %528 = vmatpush.msra.mxu0 0.0
  %529 = vmatpush.msra.mxu0 0.0
  %530 = vmatpush.msra.mxu0 0.0
  %531 = vmatpush.msra.mxu0 0.0
  %532 = vmatpush.msra.mxu0 0.0
  %533 = vmatpush.msra.mxu0 0.0
  %534 = vmatpush.msra.mxu0 0.0
  %535 = vmatpush.msra.mxu0 0.0
  %536 = vmatpush.msra.mxu0 0.0
  %537 = vmatpush.msra.mxu0 0.0
  %538 = vmatpush.msra.mxu0 0.0
  %539 = vmatpush.msra.mxu0 %v423
  %540 = vmatmul.f32.gmra.mxu0 %v522
  %v541 = vpop.f32.mrf.mxu0
  %v542 = vadd.f32 0.0, %v541
  %543 = vdwg.mxu0
  %544 = vmatpush.msra.mxu0 0.0
  %545 = vmatpush.msra.mxu0 0.0
  %546 = vmatpush.msra.mxu0 0.0
  %547 = vmatpush.msra.mxu0 0.0
  %548 = vmatpush.msra.mxu0 0.0
  %549 = vmatpush.msra.mxu0 0.0
  %550 = vmatpush.msra.mxu0 0.0
  %551 = vmatpush.msra.mxu0 0.0
  %552 = vmatpush.msra.mxu0 0.0
  %553 = vmatpush.msra.mxu0 0.0
  %554 = vmatpush.msra.mxu0 0.0
  %555 = vmatpush.msra.mxu0 0.0
  %556 = vmatpush.msra.mxu0 0.0
  %557 = vmatpush.msra.mxu0 0.0
  %558 = vmatpush.msra.mxu0 0.0
  %559 = vmatpush.msra.mxu0 %v424
  %560 = vmatmul.f32.gmra.mxu0 %v522
  %v561 = vpop.f32.mrf.mxu0
  %v562 = vadd.f32 0.0, %v561
  %563 = vdwg.mxu0
  %v564 = vadd.f32 %v517, %v542
  %v565 = vadd.f32 %v518, %v562
  %v566 = vld [vmem:[%s5] sm:$0xff]
  %v568 = vsel %vm104, %v566, 0
  %570 = vmatpush.msra.mxu0 0.0
  %571 = vmatpush.msra.mxu0 0.0
  %572 = vmatpush.msra.mxu0 0.0
  %573 = vmatpush.msra.mxu0 0.0
  %574 = vmatpush.msra.mxu0 0.0
  %575 = vmatpush.msra.mxu0 0.0
  %576 = vmatpush.msra.mxu0 0.0
  %577 = vmatpush.msra.mxu0 0.0
  %578 = vmatpush.msra.mxu0 0.0
  %579 = vmatpush.msra.mxu0 0.0
  %580 = vmatpush.msra.mxu0 0.0
  %581 = vmatpush.msra.mxu0 0.0
  %582 = vmatpush.msra.mxu0 0.0
  %583 = vmatpush.msra.mxu0 0.0
  %584 = vmatpush.msra.mxu0 0.0
  %585 = vmatpush.msra.mxu0 %v564
  %586 = vmatmul.f32.gmra.mxu0 %v568
  %v587 = vpop.f32.mrf.mxu0
  %v588 = vadd.f32 0.0, %v587
  %589 = vdwg.mxu0
  %590 = vmatpush.msra.mxu0 0.0
  %591 = vmatpush.msra.mxu0 0.0
  %592 = vmatpush.msra.mxu0 0.0
  %593 = vmatpush.msra.mxu0 0.0
  %594 = vmatpush.msra.mxu0 0.0
  %595 = vmatpush.msra.mxu0 0.0
  %596 = vmatpush.msra.mxu0 0.0
  %597 = vmatpush.msra.mxu0 0.0
  %598 = vmatpush.msra.mxu0 0.0
  %599 = vmatpush.msra.mxu0 0.0
  %600 = vmatpush.msra.mxu0 0.0
  %601 = vmatpush.msra.mxu0 0.0
  %602 = vmatpush.msra.mxu0 0.0
  %603 = vmatpush.msra.mxu0 0.0
  %604 = vmatpush.msra.mxu0 0.0
  %605 = vmatpush.msra.mxu0 %v565
  %606 = vmatmul.f32.gmra.mxu0 %v568
  %v607 = vpop.f32.mrf.mxu0
  %v608 = vadd.f32 0.0, %v607
  %609 = vdwg.mxu0
  %v610 = vadd.f32 %v588, %v608
  %611 = vadd.xlane.f32.xlu0 %v610
  %v612 = vpop.xlane.xlu0 %611
  %v613 = vsub.f32 %v564, %v612
  %v614 = vsub.f32 %v565, %v612
  %v615 = vmul.f32 %v613, %v613
  %v616 = vmul.f32 %v614, %v614
  %617 = vmatpush.msra.mxu0 0.0
  %618 = vmatpush.msra.mxu0 0.0
  %619 = vmatpush.msra.mxu0 0.0
  %620 = vmatpush.msra.mxu0 0.0
  %621 = vmatpush.msra.mxu0 0.0
  %622 = vmatpush.msra.mxu0 0.0
  %623 = vmatpush.msra.mxu0 0.0
  %624 = vmatpush.msra.mxu0 0.0
  %625 = vmatpush.msra.mxu0 0.0
  %626 = vmatpush.msra.mxu0 0.0
  %627 = vmatpush.msra.mxu0 0.0
  %628 = vmatpush.msra.mxu0 0.0
  %629 = vmatpush.msra.mxu0 0.0
  %630 = vmatpush.msra.mxu0 0.0
  %631 = vmatpush.msra.mxu0 0.0
  %632 = vmatpush.msra.mxu0 %v615
  %633 = vmatmul.f32.gmra.mxu0 %v568
  %v634 = vpop.f32.mrf.mxu0
  %v635 = vadd.f32 0.0, %v634
  %636 = vdwg.mxu0
  %637 = vmatpush.msra.mxu0 0.0
  %638 = vmatpush.msra.mxu0 0.0
  %639 = vmatpush.msra.mxu0 0.0
  %640 = vmatpush.msra.mxu0 0.0
  %641 = vmatpush.msra.mxu0 0.0
  %642 = vmatpush.msra.mxu0 0.0
  %643 = vmatpush.msra.mxu0 0.0
  %644 = vmatpush.msra.mxu0 0.0
  %645 = vmatpush.msra.mxu0 0.0
  %646 = vmatpush.msra.mxu0 0.0
  %647 = vmatpush.msra.mxu0 0.0
  %648 = vmatpush.msra.mxu0 0.0
  %649 = vmatpush.msra.mxu0 0.0
  %650 = vmatpush.msra.mxu0 0.0
  %651 = vmatpush.msra.mxu0 0.0
  %652 = vmatpush.msra.mxu0 %v616
  %653 = vmatmul.f32.gmra.mxu0 %v568
  %v654 = vpop.f32.mrf.mxu0
  %v655 = vadd.f32 0.0, %v654
  %656 = vdwg.mxu0
  %v657 = vadd.f32 %v635, %v655
  %658 = vadd.xlane.f32.xlu0 %v657
  %v659 = vpop.xlane.xlu0 %658
  %v660 = vld [vmem:[%s6] sm:$0xff]
  %v661 = vadd.f32 %v659, 1e-05
  %v662 = vrsqrt.pop %v661
  %v663 = vmul.f32 %v662, %v661
  %v664 = vmul.f32 %v663, %v662
  %v665 = vmul.f32 0.5, %v664
  %v666 = vsub.f32 1.5, %v665
  %v667 = vmul.f32 %v662, %v666
  %vm668 = vweird.f32 %v661
  %vm669 = vweird.f32 %v662
  %vm670 = vmor %vm668, %vm669
  %v671 = vsel %vm670, %v662, %v667
  %v672 = vmul.f32 %v660, %v671
  %v673 = vld [vmem:[%s7] sm:$0xff]
  %v674 = vmul.f32 %v612, %v672
  %v675 = vsub.f32 %v673, %v674
  %677 = vset.pattern.permute.xlu0 0
  %678 = vperm.xlu0 %677, %v672
  %v679 = vpop.permute.xlu0 %678
  %v681 = vmul.f32 %v564, %v679
  %v682 = vmul.f32 %v565, %v679
  %684 = vset.pattern.permute.xlu0 0
  %685 = vperm.xlu0 %684, %v675
  %v686 = vpop.permute.xlu0 %685
  %v688 = vadd.f32 %v681, %v686
  %v689 = vadd.f32 %v682, %v686
  %v690 = vmax.f32 %v688, 0.0
  %v691 = vmax.f32 %v689, 0.0
  %693 = vrot.lane.b32.xlu0 %v691, 1
  %v694 = vpop.permute.xlu0 %693
  %697 = vrot.lane.b32.xlu0 %v690, 1
  %v698 = vpop.permute.xlu0 %697
  %v699 = vsel %vm56, %v698, %v694
  %v702 = vsel %vm56, %v694, %v698
  %703 = vrot.lane.b32.xlu0 %v690, 127
  %v704 = vpop.permute.xlu0 %703
  %705 = vrot.lane.b32.xlu0 %v691, 127
  %v706 = vpop.permute.xlu0 %705
  %v707 = vsel %vm65, %v704, %v706
  %v711 = vsel %vm65, %v706, %v704
  %v712 = vsel %vm41, %v707, %v702
  %v713 = vsel %vm42, %v711, %v699
  %v714 = vsel %vm43, %v702, %v707
  %v715 = vsel %vm44, %v699, %v711
  %717 = vrot.lane.b32.xlu0 %v713, 16
  %v718 = vpop.permute.xlu0 %717
  %721 = vrot.lane.b32.xlu0 %v712, 16
  %v722 = vpop.permute.xlu0 %721
  %v723 = vsel %vm82, %v722, %v718
  %v726 = vsel %vm82, %v718, %v722
  %727 = vrot.lane.b32.xlu0 %v712, 112
  %v728 = vpop.permute.xlu0 %727
  %729 = vrot.lane.b32.xlu0 %v713, 112
  %v730 = vpop.permute.xlu0 %729
  %v731 = vsel %vm91, %v728, %v730
  %v735 = vsel %vm91, %v730, %v728
  %v736 = vsel %vm45, %v731, %v726
  %v737 = vsel %vm46, %v735, %v723
  %v738 = vsel %vm47, %v726, %v731
  %v739 = vsel %vm48, %v723, %v735
  %v740 = vld [vmem:[%s4] sm:$0xff]
  %s741 = scalar_lea.vmem %s4, 8
  %v742 = vld [vmem:[%s741] sm:$0xff]
  %v744 = vsel %vm104, %v742, 0
  %746 = vmatpush.msra.mxu0 0.0
  %747 = vmatpush.msra.mxu0 0.0
  %748 = vmatpush.msra.mxu0 0.0
  %749 = vmatpush.msra.mxu0 0.0
  %750 = vmatpush.msra.mxu0 0.0
  %751 = vmatpush.msra.mxu0 0.0
  %752 = vmatpush.msra.mxu0 0.0
  %753 = vmatpush.msra.mxu0 0.0
  %754 = vmatpush.msra.mxu0 0.0
  %755 = vmatpush.msra.mxu0 0.0
  %756 = vmatpush.msra.mxu0 0.0
  %757 = vmatpush.msra.mxu0 0.0
  %758 = vmatpush.msra.mxu0 0.0
  %759 = vmatpush.msra.mxu0 0.0
  %760 = vmatpush.msra.mxu0 0.0
  %761 = vmatpush.msra.mxu0 %v712
  %762 = vmatmul.f32.gmra.mxu0 %v744
  %v763 = vpop.f32.mrf.mxu0
  %v764 = vadd.f32 0.0, %v763
  %765 = vdwg.mxu0
  %766 = vmatpush.msra.mxu0 0.0
  %767 = vmatpush.msra.mxu0 0.0
  %768 = vmatpush.msra.mxu0 0.0
  %769 = vmatpush.msra.mxu0 0.0
  %770 = vmatpush.msra.mxu0 0.0
  %771 = vmatpush.msra.mxu0 0.0
  %772 = vmatpush.msra.mxu0 0.0
  %773 = vmatpush.msra.mxu0 0.0
  %774 = vmatpush.msra.mxu0 0.0
  %775 = vmatpush.msra.mxu0 0.0
  %776 = vmatpush.msra.mxu0 0.0
  %777 = vmatpush.msra.mxu0 0.0
  %778 = vmatpush.msra.mxu0 0.0
  %779 = vmatpush.msra.mxu0 0.0
  %780 = vmatpush.msra.mxu0 0.0
  %781 = vmatpush.msra.mxu0 %v713
  %782 = vmatmul.f32.gmra.mxu0 %v744
  %v783 = vpop.f32.mrf.mxu0
  %v784 = vadd.f32 0.0, %v783
  %785 = vdwg.mxu0
  %v787 = vsel %vm104, %v740, 0
  %789 = vmatpush.msra.mxu0 0.0
  %790 = vmatpush.msra.mxu0 0.0
  %791 = vmatpush.msra.mxu0 0.0
  %792 = vmatpush.msra.mxu0 0.0
  %793 = vmatpush.msra.mxu0 0.0
  %794 = vmatpush.msra.mxu0 0.0
  %795 = vmatpush.msra.mxu0 0.0
  %796 = vmatpush.msra.mxu0 0.0
  %797 = vmatpush.msra.mxu0 0.0
  %798 = vmatpush.msra.mxu0 0.0
  %799 = vmatpush.msra.mxu0 0.0
  %800 = vmatpush.msra.mxu0 0.0
  %801 = vmatpush.msra.mxu0 0.0
  %802 = vmatpush.msra.mxu0 0.0
  %803 = vmatpush.msra.mxu0 0.0
  %804 = vmatpush.msra.mxu0 %v736
  %805 = vmatmul.f32.gmra.mxu0 %v787
  %v806 = vpop.f32.mrf.mxu0
  %v807 = vadd.f32 %v764, %v806
  %808 = vdwg.mxu0
  %809 = vmatpush.msra.mxu0 0.0
  %810 = vmatpush.msra.mxu0 0.0
  %811 = vmatpush.msra.mxu0 0.0
  %812 = vmatpush.msra.mxu0 0.0
  %813 = vmatpush.msra.mxu0 0.0
  %814 = vmatpush.msra.mxu0 0.0
  %815 = vmatpush.msra.mxu0 0.0
  %816 = vmatpush.msra.mxu0 0.0
  %817 = vmatpush.msra.mxu0 0.0
  %818 = vmatpush.msra.mxu0 0.0
  %819 = vmatpush.msra.mxu0 0.0
  %820 = vmatpush.msra.mxu0 0.0
  %821 = vmatpush.msra.mxu0 0.0
  %822 = vmatpush.msra.mxu0 0.0
  %823 = vmatpush.msra.mxu0 0.0
  %824 = vmatpush.msra.mxu0 %v737
  %825 = vmatmul.f32.gmra.mxu0 %v787
  %v826 = vpop.f32.mrf.mxu0
  %v827 = vadd.f32 %v784, %v826
  %828 = vdwg.mxu0
  %s829 = scalar_lea.vmem %s4, 16
  %v830 = vld [vmem:[%s829] sm:$0xff]
  %v832 = vsel %vm104, %v830, 0
  %834 = vmatpush.msra.mxu0 0.0
  %835 = vmatpush.msra.mxu0 0.0
  %836 = vmatpush.msra.mxu0 0.0
  %837 = vmatpush.msra.mxu0 0.0
  %838 = vmatpush.msra.mxu0 0.0
  %839 = vmatpush.msra.mxu0 0.0
  %840 = vmatpush.msra.mxu0 0.0
  %841 = vmatpush.msra.mxu0 0.0
  %842 = vmatpush.msra.mxu0 0.0
  %843 = vmatpush.msra.mxu0 0.0
  %844 = vmatpush.msra.mxu0 0.0
  %845 = vmatpush.msra.mxu0 0.0
  %846 = vmatpush.msra.mxu0 0.0
  %847 = vmatpush.msra.mxu0 0.0
  %848 = vmatpush.msra.mxu0 0.0
  %849 = vmatpush.msra.mxu0 %v738
  %850 = vmatmul.f32.gmra.mxu0 %v832
  %v851 = vpop.f32.mrf.mxu0
  %v852 = vadd.f32 0.0, %v851
  %853 = vdwg.mxu0
  %854 = vmatpush.msra.mxu0 0.0
  %855 = vmatpush.msra.mxu0 0.0
  %856 = vmatpush.msra.mxu0 0.0
  %857 = vmatpush.msra.mxu0 0.0
  %858 = vmatpush.msra.mxu0 0.0
  %859 = vmatpush.msra.mxu0 0.0
  %860 = vmatpush.msra.mxu0 0.0
  %861 = vmatpush.msra.mxu0 0.0
  %862 = vmatpush.msra.mxu0 0.0
  %863 = vmatpush.msra.mxu0 0.0
  %864 = vmatpush.msra.mxu0 0.0
  %865 = vmatpush.msra.mxu0 0.0
  %866 = vmatpush.msra.mxu0 0.0
  %867 = vmatpush.msra.mxu0 0.0
  %868 = vmatpush.msra.mxu0 0.0
  %869 = vmatpush.msra.mxu0 %v739
  %870 = vmatmul.f32.gmra.mxu0 %v832
  %v871 = vpop.f32.mrf.mxu0
  %v872 = vadd.f32 0.0, %v871
  %873 = vdwg.mxu0
  %v874 = vadd.f32 %v807, %v852
  %v875 = vadd.f32 %v827, %v872
  %876 = vrot.lane.b32.xlu0 %v691, 16
  %v877 = vpop.permute.xlu0 %876
  %879 = vrot.lane.b32.xlu0 %v690, 16
  %v880 = vpop.permute.xlu0 %879
  %v881 = vsel %vm82, %v880, %v877
  %v884 = vsel %vm82, %v877, %v880
  %885 = vrot.lane.b32.xlu0 %v690, 112
  %v886 = vpop.permute.xlu0 %885
  %887 = vrot.lane.b32.xlu0 %v691, 112
  %v888 = vpop.permute.xlu0 %887
  %v889 = vsel %vm91, %v886, %v888
  %v893 = vsel %vm91, %v888, %v886
  %v894 = vsel %vm45, %v889, %v884
  %v895 = vsel %vm46, %v893, %v881
  %v896 = vsel %vm47, %v884, %v889
  %v897 = vsel %vm48, %v881, %v893
  %s898 = scalar_lea.vmem %s4, 24
  %v899 = vld [vmem:[%s898] sm:$0xff]
  %v901 = vsel %vm104, %v899, 0
  %903 = vmatpush.msra.mxu0 0.0
  %904 = vmatpush.msra.mxu0 0.0
  %905 = vmatpush.msra.mxu0 0.0
  %906 = vmatpush.msra.mxu0 0.0
  %907 = vmatpush.msra.mxu0 0.0
  %908 = vmatpush.msra.mxu0 0.0
  %909 = vmatpush.msra.mxu0 0.0
  %910 = vmatpush.msra.mxu0 0.0
  %911 = vmatpush.msra.mxu0 0.0
  %912 = vmatpush.msra.mxu0 0.0
  %913 = vmatpush.msra.mxu0 0.0
  %914 = vmatpush.msra.mxu0 0.0
  %915 = vmatpush.msra.mxu0 0.0
  %916 = vmatpush.msra.mxu0 0.0
  %917 = vmatpush.msra.mxu0 0.0
  %918 = vmatpush.msra.mxu0 %v894
  %919 = vmatmul.f32.gmra.mxu0 %v901
  %v920 = vpop.f32.mrf.mxu0
  %v921 = vadd.f32 0.0, %v920
  %922 = vdwg.mxu0
  %923 = vmatpush.msra.mxu0 0.0
  %924 = vmatpush.msra.mxu0 0.0
  %925 = vmatpush.msra.mxu0 0.0
  %926 = vmatpush.msra.mxu0 0.0
  %927 = vmatpush.msra.mxu0 0.0
  %928 = vmatpush.msra.mxu0 0.0
  %929 = vmatpush.msra.mxu0 0.0
  %930 = vmatpush.msra.mxu0 0.0
  %931 = vmatpush.msra.mxu0 0.0
  %932 = vmatpush.msra.mxu0 0.0
  %933 = vmatpush.msra.mxu0 0.0
  %934 = vmatpush.msra.mxu0 0.0
  %935 = vmatpush.msra.mxu0 0.0
  %936 = vmatpush.msra.mxu0 0.0
  %937 = vmatpush.msra.mxu0 0.0
  %938 = vmatpush.msra.mxu0 %v895
  %939 = vmatmul.f32.gmra.mxu0 %v901
  %v940 = vpop.f32.mrf.mxu0
  %v941 = vadd.f32 0.0, %v940
  %942 = vdwg.mxu0
  %v943 = vadd.f32 %v874, %v921
  %v944 = vadd.f32 %v875, %v941
  %s945 = scalar_lea.vmem %s4, 32
  %v946 = vld [vmem:[%s945] sm:$0xff]
  %v948 = vsel %vm104, %v946, 0
  %950 = vmatpush.msra.mxu0 0.0
  %951 = vmatpush.msra.mxu0 0.0
  %952 = vmatpush.msra.mxu0 0.0
  %953 = vmatpush.msra.mxu0 0.0
  %954 = vmatpush.msra.mxu0 0.0
  %955 = vmatpush.msra.mxu0 0.0
  %956 = vmatpush.msra.mxu0 0.0
  %957 = vmatpush.msra.mxu0 0.0
  %958 = vmatpush.msra.mxu0 0.0
  %959 = vmatpush.msra.mxu0 0.0
  %960 = vmatpush.msra.mxu0 0.0
  %961 = vmatpush.msra.mxu0 0.0
  %962 = vmatpush.msra.mxu0 0.0
  %963 = vmatpush.msra.mxu0 0.0
  %964 = vmatpush.msra.mxu0 0.0
  %965 = vmatpush.msra.mxu0 %v690
  %966 = vmatmul.f32.gmra.mxu0 %v948
  %v967 = vpop.f32.mrf.mxu0
  %v968 = vadd.f32 0.0, %v967
  %969 = vdwg.mxu0
  %970 = vmatpush.msra.mxu0 0.0
  %971 = vmatpush.msra.mxu0 0.0
  %972 = vmatpush.msra.mxu0 0.0
  %973 = vmatpush.msra.mxu0 0.0
  %974 = vmatpush.msra.mxu0 0.0
  %975 = vmatpush.msra.mxu0 0.0
  %976 = vmatpush.msra.mxu0 0.0
  %977 = vmatpush.msra.mxu0 0.0
  %978 = vmatpush.msra.mxu0 0.0
  %979 = vmatpush.msra.mxu0 0.0
  %980 = vmatpush.msra.mxu0 0.0
  %981 = vmatpush.msra.mxu0 0.0
  %982 = vmatpush.msra.mxu0 0.0
  %983 = vmatpush.msra.mxu0 0.0
  %984 = vmatpush.msra.mxu0 0.0
  %985 = vmatpush.msra.mxu0 %v691
  %986 = vmatmul.f32.gmra.mxu0 %v948
  %v987 = vpop.f32.mrf.mxu0
  %v988 = vadd.f32 0.0, %v987
  %989 = vdwg.mxu0
  %v990 = vadd.f32 %v943, %v968
  %v991 = vadd.f32 %v944, %v988
  %s992 = scalar_lea.vmem %s4, 40
  %v993 = vld [vmem:[%s992] sm:$0xff]
  %v995 = vsel %vm104, %v993, 0
  %997 = vmatpush.msra.mxu0 0.0
  %998 = vmatpush.msra.mxu0 0.0
  %999 = vmatpush.msra.mxu0 0.0
  %1000 = vmatpush.msra.mxu0 0.0
  %1001 = vmatpush.msra.mxu0 0.0
  %1002 = vmatpush.msra.mxu0 0.0
  %1003 = vmatpush.msra.mxu0 0.0
  %1004 = vmatpush.msra.mxu0 0.0
  %1005 = vmatpush.msra.mxu0 0.0
  %1006 = vmatpush.msra.mxu0 0.0
  %1007 = vmatpush.msra.mxu0 0.0
  %1008 = vmatpush.msra.mxu0 0.0
  %1009 = vmatpush.msra.mxu0 0.0
  %1010 = vmatpush.msra.mxu0 0.0
  %1011 = vmatpush.msra.mxu0 0.0
  %1012 = vmatpush.msra.mxu0 %v896
  %1013 = vmatmul.f32.gmra.mxu0 %v995
  %v1014 = vpop.f32.mrf.mxu0
  %v1015 = vadd.f32 0.0, %v1014
  %1016 = vdwg.mxu0
  %1017 = vmatpush.msra.mxu0 0.0
  %1018 = vmatpush.msra.mxu0 0.0
  %1019 = vmatpush.msra.mxu0 0.0
  %1020 = vmatpush.msra.mxu0 0.0
  %1021 = vmatpush.msra.mxu0 0.0
  %1022 = vmatpush.msra.mxu0 0.0
  %1023 = vmatpush.msra.mxu0 0.0
  %1024 = vmatpush.msra.mxu0 0.0
  %1025 = vmatpush.msra.mxu0 0.0
  %1026 = vmatpush.msra.mxu0 0.0
  %1027 = vmatpush.msra.mxu0 0.0
  %1028 = vmatpush.msra.mxu0 0.0
  %1029 = vmatpush.msra.mxu0 0.0
  %1030 = vmatpush.msra.mxu0 0.0
  %1031 = vmatpush.msra.mxu0 0.0
  %1032 = vmatpush.msra.mxu0 %v897
  %1033 = vmatmul.f32.gmra.mxu0 %v995
  %v1034 = vpop.f32.mrf.mxu0
  %v1035 = vadd.f32 0.0, %v1034
  %1036 = vdwg.mxu0
  %v1037 = vadd.f32 %v990, %v1015
  %v1038 = vadd.f32 %v991, %v1035
  %1040 = vrot.lane.b32.xlu0 %v715, 16
  %v1041 = vpop.permute.xlu0 %1040
  %1044 = vrot.lane.b32.xlu0 %v714, 16
  %v1045 = vpop.permute.xlu0 %1044
  %v1046 = vsel %vm82, %v1045, %v1041
  %v1049 = vsel %vm82, %v1041, %v1045
  %1050 = vrot.lane.b32.xlu0 %v714, 112
  %v1051 = vpop.permute.xlu0 %1050
  %1052 = vrot.lane.b32.xlu0 %v715, 112
  %v1053 = vpop.permute.xlu0 %1052
  %v1054 = vsel %vm91, %v1051, %v1053
  %v1058 = vsel %vm91, %v1053, %v1051
  %v1059 = vsel %vm45, %v1054, %v1049
  %v1060 = vsel %vm46, %v1058, %v1046
  %v1061 = vsel %vm47, %v1049, %v1054
  %v1062 = vsel %vm48, %v1046, %v1058
  %s1063 = scalar_lea.vmem %s4, 48
  %v1064 = vld [vmem:[%s1063] sm:$0xff]
  %v1066 = vsel %vm104, %v1064, 0
  %1068 = vmatpush.msra.mxu0 0.0
  %1069 = vmatpush.msra.mxu0 0.0
  %1070 = vmatpush.msra.mxu0 0.0
  %1071 = vmatpush.msra.mxu0 0.0
  %1072 = vmatpush.msra.mxu0 0.0
  %1073 = vmatpush.msra.mxu0 0.0
  %1074 = vmatpush.msra.mxu0 0.0
  %1075 = vmatpush.msra.mxu0 0.0
  %1076 = vmatpush.msra.mxu0 0.0
  %1077 = vmatpush.msra.mxu0 0.0
  %1078 = vmatpush.msra.mxu0 0.0
  %1079 = vmatpush.msra.mxu0 0.0
  %1080 = vmatpush.msra.mxu0 0.0
  %1081 = vmatpush.msra.mxu0 0.0
  %1082 = vmatpush.msra.mxu0 0.0
  %1083 = vmatpush.msra.mxu0 %v1059
  %1084 = vmatmul.f32.gmra.mxu0 %v1066
  %v1085 = vpop.f32.mrf.mxu0
  %v1086 = vadd.f32 0.0, %v1085
  %1087 = vdwg.mxu0
  %1088 = vmatpush.msra.mxu0 0.0
  %1089 = vmatpush.msra.mxu0 0.0
  %1090 = vmatpush.msra.mxu0 0.0
  %1091 = vmatpush.msra.mxu0 0.0
  %1092 = vmatpush.msra.mxu0 0.0
  %1093 = vmatpush.msra.mxu0 0.0
  %1094 = vmatpush.msra.mxu0 0.0
  %1095 = vmatpush.msra.mxu0 0.0
  %1096 = vmatpush.msra.mxu0 0.0
  %1097 = vmatpush.msra.mxu0 0.0
  %1098 = vmatpush.msra.mxu0 0.0
  %1099 = vmatpush.msra.mxu0 0.0
  %1100 = vmatpush.msra.mxu0 0.0
  %1101 = vmatpush.msra.mxu0 0.0
  %1102 = vmatpush.msra.mxu0 0.0
  %1103 = vmatpush.msra.mxu0 %v1060
  %1104 = vmatmul.f32.gmra.mxu0 %v1066
  %v1105 = vpop.f32.mrf.mxu0
  %v1106 = vadd.f32 0.0, %v1105
  %1107 = vdwg.mxu0
  %v1108 = vadd.f32 %v1037, %v1086
  %v1109 = vadd.f32 %v1038, %v1106
  %s1110 = scalar_lea.vmem %s4, 56
  %v1111 = vld [vmem:[%s1110] sm:$0xff]
  %v1113 = vsel %vm104, %v1111, 0
  %1115 = vmatpush.msra.mxu0 0.0
  %1116 = vmatpush.msra.mxu0 0.0
  %1117 = vmatpush.msra.mxu0 0.0
  %1118 = vmatpush.msra.mxu0 0.0
  %1119 = vmatpush.msra.mxu0 0.0
  %1120 = vmatpush.msra.mxu0 0.0
  %1121 = vmatpush.msra.mxu0 0.0
  %1122 = vmatpush.msra.mxu0 0.0
  %1123 = vmatpush.msra.mxu0 0.0
  %1124 = vmatpush.msra.mxu0 0.0
  %1125 = vmatpush.msra.mxu0 0.0
  %1126 = vmatpush.msra.mxu0 0.0
  %1127 = vmatpush.msra.mxu0 0.0
  %1128 = vmatpush.msra.mxu0 0.0
  %1129 = vmatpush.msra.mxu0 0.0
  %1130 = vmatpush.msra.mxu0 %v714
  %1131 = vmatmul.f32.gmra.mxu0 %v1113
  %v1132 = vpop.f32.mrf.mxu0
  %v1133 = vadd.f32 0.0, %v1132
  %1134 = vdwg.mxu0
  %1135 = vmatpush.msra.mxu0 0.0
  %1136 = vmatpush.msra.mxu0 0.0
  %1137 = vmatpush.msra.mxu0 0.0
  %1138 = vmatpush.msra.mxu0 0.0
  %1139 = vmatpush.msra.mxu0 0.0
  %1140 = vmatpush.msra.mxu0 0.0
  %1141 = vmatpush.msra.mxu0 0.0
  %1142 = vmatpush.msra.mxu0 0.0
  %1143 = vmatpush.msra.mxu0 0.0
  %1144 = vmatpush.msra.mxu0 0.0
  %1145 = vmatpush.msra.mxu0 0.0
  %1146 = vmatpush.msra.mxu0 0.0
  %1147 = vmatpush.msra.mxu0 0.0
  %1148 = vmatpush.msra.mxu0 0.0
  %1149 = vmatpush.msra.mxu0 0.0
  %1150 = vmatpush.msra.mxu0 %v715
  %1151 = vmatmul.f32.gmra.mxu0 %v1113
  %v1152 = vpop.f32.mrf.mxu0
  %v1153 = vadd.f32 0.0, %v1152
  %1154 = vdwg.mxu0
  %v1155 = vadd.f32 %v1108, %v1133
  %v1156 = vadd.f32 %v1109, %v1153
  %s1157 = scalar_lea.vmem %s4, 64
  %v1158 = vld [vmem:[%s1157] sm:$0xff]
  %v1160 = vsel %vm104, %v1158, 0
  %1162 = vmatpush.msra.mxu0 0.0
  %1163 = vmatpush.msra.mxu0 0.0
  %1164 = vmatpush.msra.mxu0 0.0
  %1165 = vmatpush.msra.mxu0 0.0
  %1166 = vmatpush.msra.mxu0 0.0
  %1167 = vmatpush.msra.mxu0 0.0
  %1168 = vmatpush.msra.mxu0 0.0
  %1169 = vmatpush.msra.mxu0 0.0
  %1170 = vmatpush.msra.mxu0 0.0
  %1171 = vmatpush.msra.mxu0 0.0
  %1172 = vmatpush.msra.mxu0 0.0
  %1173 = vmatpush.msra.mxu0 0.0
  %1174 = vmatpush.msra.mxu0 0.0
  %1175 = vmatpush.msra.mxu0 0.0
  %1176 = vmatpush.msra.mxu0 0.0
  %1177 = vmatpush.msra.mxu0 %v1061
  %1178 = vmatmul.f32.gmra.mxu0 %v1160
  %v1179 = vpop.f32.mrf.mxu0
  %v1180 = vadd.f32 0.0, %v1179
  %1181 = vdwg.mxu0
  %1182 = vmatpush.msra.mxu0 0.0
  %1183 = vmatpush.msra.mxu0 0.0
  %1184 = vmatpush.msra.mxu0 0.0
  %1185 = vmatpush.msra.mxu0 0.0
  %1186 = vmatpush.msra.mxu0 0.0
  %1187 = vmatpush.msra.mxu0 0.0
  %1188 = vmatpush.msra.mxu0 0.0
  %1189 = vmatpush.msra.mxu0 0.0
  %1190 = vmatpush.msra.mxu0 0.0
  %1191 = vmatpush.msra.mxu0 0.0
  %1192 = vmatpush.msra.mxu0 0.0
  %1193 = vmatpush.msra.mxu0 0.0
  %1194 = vmatpush.msra.mxu0 0.0
  %1195 = vmatpush.msra.mxu0 0.0
  %1196 = vmatpush.msra.mxu0 0.0
  %1197 = vmatpush.msra.mxu0 %v1062
  %1198 = vmatmul.f32.gmra.mxu0 %v1160
  %v1199 = vpop.f32.mrf.mxu0
  %v1200 = vadd.f32 0.0, %v1199
  %1201 = vdwg.mxu0
  %v1202 = vadd.f32 %v1155, %v1180
  %v1203 = vadd.f32 %v1156, %v1200
  %1204 = vmatpush.msra.mxu0 0.0
  %1205 = vmatpush.msra.mxu0 0.0
  %1206 = vmatpush.msra.mxu0 0.0
  %1207 = vmatpush.msra.mxu0 0.0
  %1208 = vmatpush.msra.mxu0 0.0
  %1209 = vmatpush.msra.mxu0 0.0
  %1210 = vmatpush.msra.mxu0 0.0
  %1211 = vmatpush.msra.mxu0 0.0
  %1212 = vmatpush.msra.mxu0 0.0
  %1213 = vmatpush.msra.mxu0 0.0
  %1214 = vmatpush.msra.mxu0 0.0
  %1215 = vmatpush.msra.mxu0 0.0
  %1216 = vmatpush.msra.mxu0 0.0
  %1217 = vmatpush.msra.mxu0 0.0
  %1218 = vmatpush.msra.mxu0 0.0
  %1219 = vmatpush.msra.mxu0 %v1202
  %1220 = vmatmul.f32.gmra.mxu0 %v568
  %v1221 = vpop.f32.mrf.mxu0
  %v1222 = vadd.f32 0.0, %v1221
  %1223 = vdwg.mxu0
  %1224 = vmatpush.msra.mxu0 0.0
  %1225 = vmatpush.msra.mxu0 0.0
  %1226 = vmatpush.msra.mxu0 0.0
  %1227 = vmatpush.msra.mxu0 0.0
  %1228 = vmatpush.msra.mxu0 0.0
  %1229 = vmatpush.msra.mxu0 0.0
  %1230 = vmatpush.msra.mxu0 0.0
  %1231 = vmatpush.msra.mxu0 0.0
  %1232 = vmatpush.msra.mxu0 0.0
  %1233 = vmatpush.msra.mxu0 0.0
  %1234 = vmatpush.msra.mxu0 0.0
  %1235 = vmatpush.msra.mxu0 0.0
  %1236 = vmatpush.msra.mxu0 0.0
  %1237 = vmatpush.msra.mxu0 0.0
  %1238 = vmatpush.msra.mxu0 0.0
  %1239 = vmatpush.msra.mxu0 %v1203
  %1240 = vmatmul.f32.gmra.mxu0 %v568
  %v1241 = vpop.f32.mrf.mxu0
  %v1242 = vadd.f32 0.0, %v1241
  %1243 = vdwg.mxu0
  %v1244 = vadd.f32 %v1222, %v1242
  %1245 = vadd.xlane.f32.xlu0 %v1244
  %v1246 = vpop.xlane.xlu0 %1245
  %v1247 = vsub.f32 %v1202, %v1246
  %v1248 = vsub.f32 %v1203, %v1246
  %v1249 = vmul.f32 %v1247, %v1247
  %v1250 = vmul.f32 %v1248, %v1248
  %1251 = vmatpush.msra.mxu0 0.0
  %1252 = vmatpush.msra.mxu0 0.0
  %1253 = vmatpush.msra.mxu0 0.0
  %1254 = vmatpush.msra.mxu0 0.0
  %1255 = vmatpush.msra.mxu0 0.0
  %1256 = vmatpush.msra.mxu0 0.0
  %1257 = vmatpush.msra.mxu0 0.0
  %1258 = vmatpush.msra.mxu0 0.0
  %1259 = vmatpush.msra.mxu0 0.0
  %1260 = vmatpush.msra.mxu0 0.0
  %1261 = vmatpush.msra.mxu0 0.0
  %1262 = vmatpush.msra.mxu0 0.0
  %1263 = vmatpush.msra.mxu0 0.0
  %1264 = vmatpush.msra.mxu0 0.0
  %1265 = vmatpush.msra.mxu0 0.0
  %1266 = vmatpush.msra.mxu0 %v1249
  %1267 = vmatmul.f32.gmra.mxu0 %v568
  %v1268 = vpop.f32.mrf.mxu0
  %v1269 = vadd.f32 0.0, %v1268
  %1270 = vdwg.mxu0
  %1271 = vmatpush.msra.mxu0 0.0
  %1272 = vmatpush.msra.mxu0 0.0
  %1273 = vmatpush.msra.mxu0 0.0
  %1274 = vmatpush.msra.mxu0 0.0
  %1275 = vmatpush.msra.mxu0 0.0
  %1276 = vmatpush.msra.mxu0 0.0
  %1277 = vmatpush.msra.mxu0 0.0
  %1278 = vmatpush.msra.mxu0 0.0
  %1279 = vmatpush.msra.mxu0 0.0
  %1280 = vmatpush.msra.mxu0 0.0
  %1281 = vmatpush.msra.mxu0 0.0
  %1282 = vmatpush.msra.mxu0 0.0
  %1283 = vmatpush.msra.mxu0 0.0
  %1284 = vmatpush.msra.mxu0 0.0
  %1285 = vmatpush.msra.mxu0 0.0
  %1286 = vmatpush.msra.mxu0 %v1250
  %1287 = vmatmul.f32.gmra.mxu0 %v568
  %v1288 = vpop.f32.mrf.mxu0
  %v1289 = vadd.f32 0.0, %v1288
  %1290 = vdwg.mxu0
  %v1291 = vadd.f32 %v1269, %v1289
  %1292 = vadd.xlane.f32.xlu0 %v1291
  %v1293 = vpop.xlane.xlu0 %1292
  %v1294 = vld [vmem:[%s8] sm:$0xff]
  %v1295 = vadd.f32 %v1293, 1e-05
  %v1296 = vrsqrt.pop %v1295
  %v1297 = vmul.f32 %v1296, %v1295
  %v1298 = vmul.f32 %v1297, %v1296
  %v1299 = vmul.f32 0.5, %v1298
  %v1300 = vsub.f32 1.5, %v1299
  %v1301 = vmul.f32 %v1296, %v1300
  %vm1302 = vweird.f32 %v1295
  %vm1303 = vweird.f32 %v1296
  %vm1304 = vmor %vm1302, %vm1303
  %v1305 = vsel %vm1304, %v1296, %v1301
  %v1306 = vmul.f32 %v1294, %v1305
  %v1307 = vld [vmem:[%s9] sm:$0xff]
  %v1308 = vmul.f32 %v1246, %v1306
  %v1309 = vsub.f32 %v1307, %v1308
  %1311 = vset.pattern.permute.xlu0 0
  %1312 = vperm.xlu0 %1311, %v1306
  %v1313 = vpop.permute.xlu0 %1312
  %v1315 = vmul.f32 %v1202, %v1313
  %v1316 = vmul.f32 %v1203, %v1313
  %1318 = vset.pattern.permute.xlu0 0
  %1319 = vperm.xlu0 %1318, %v1309
  %v1320 = vpop.permute.xlu0 %1319
  %v1322 = vadd.f32 %v1315, %v1320
  %v1323 = vadd.f32 %v1316, %v1320
  %v1324 = vadd.f32 %v1322, %v35
  %v1325 = vadd.f32 %v1323, %v36
  %v1326 = vmax.f32 %v1324, 0.0
  %v1327 = vmax.f32 %v1325, 0.0
  %1328 = vst [vmem:[%s10] sm:$0xff] %v1326
  %1329 = vst [vmem:[%s10 + $0x8] sm:$0xff] %v1327
  // Predicated region
  $region42: #{res_block_standard.1} parent=0 // pred_check
    _
  $region43: #{res_block_standard.1} parent=0 // pred_check_branch
    %1331 = sbr.rel (0) target = $region45
  $region44: #{res_block_standard.1} parent=0 // pred_region
    _
  $region45: #{res_block_standard.1} parent=0 // pred_fallthru
    _
  // Predicated region
  $region46: #{res_block_standard.1} parent=0 // pred_check
    _
  $region47: #{res_block_standard.1} parent=0 // pred_check_branch
    %1333 = sbr.rel (0) target = $region49
  $region48: #{res_block_standard.1} parent=0 // pred_region
    _
  $region49: #{res_block_standard.1} parent=0 // pred_fallthru
    _

</llo_original>
